<compile_context>
chip_gen: v6e
topology: v6e:2x2x1
jax: 0.10.0
libtpu: 0.0.40
codegen_flags: <defaults>
</compile_context>

<pallas_src>
import math

import numpy as np
import jax
import jax.numpy as jnp
from jax.experimental import pallas as pl
from jax.experimental.pallas import tpu as pltpu

# ---- torchaudio.transforms.LFCC(n_lfcc=60) defaults -------------------------
SAMPLE_RATE = 16000
N_FFT = 400                  # Spectrogram default
HOP = 200                    # win_length // 2
N_FREQS = N_FFT // 2 + 1     # 201 (onesided)
FREQ_PAD = 256               # lane-padded width per re/im half
N_FILTER = 128               # linear filterbank size
N_LFCC = 60
LFCC_PAD = 128               # lane-padded LFCC output width
N_CLASSES = 2                # stand-in classifier head width
HEAD_PAD = 128               # lane-padded head output width
MAX_ROW_TILE = 1024          # frame-row tile for the LFCC kernel
MAX_BATCH_TILE = 8           # batch elements per grid step in kernel 2

assert N_FFT == 2 * HOP      # required by the overlap-by-reshape framing trick


# -----------------------------------------------------------------------------
# Constant matrices (built with numpy at trace time, consumed by the kernels)
# -----------------------------------------------------------------------------
def _linear_fbanks_np():
    # torchaudio.functional.linear_fbanks(n_freqs, 0, sr//2, n_filter, sr)
    all_freqs = np.linspace(0.0, float(SAMPLE_RATE // 2), N_FREQS)
    f_pts = np.linspace(0.0, float(SAMPLE_RATE // 2), N_FILTER + 2)
    f_diff = f_pts[1:] - f_pts[:-1]
    slopes = f_pts[None, :] - all_freqs[:, None]              # (N_FREQS, N_FILTER+2)
    down = (-1.0 * slopes[:, :-2]) / f_diff[:-1]
    up = slopes[:, 2:] / f_diff[1:]
    return np.maximum(0.0, np.minimum(down, up)).astype(np.float32)  # (201, 128)


def _create_dct_np():
    # torchaudio.functional.create_dct(n_lfcc, n_filter, norm="ortho")
    n = np.arange(N_FILTER, dtype=np.float64)
    k = np.arange(N_LFCC, dtype=np.float64)[:, None]
    dct = np.cos(math.pi / N_FILTER * (n + 0.5) * k)           # (N_LFCC, N_FILTER)
    dct[0] *= 1.0 / math.sqrt(2.0)
    dct *= math.sqrt(2.0 / N_FILTER)
    return dct.T.astype(np.float32)                            # (N_FILTER, N_LFCC)


def lfcc_weights():
    """Fused, lane-padded weights for the LFCC kernel."""
    n = np.arange(N_FFT, dtype=np.float64)
    hann = 0.5 - 0.5 * np.cos(2.0 * math.pi * n / N_FFT)        # periodic hann
    f = np.arange(N_FREQS, dtype=np.float64)[None, :]
    ang = 2.0 * math.pi * n[:, None] * f / N_FFT
    w_cos = np.cos(ang) * hann[:, None]                         # hann folded into DFT
    w_sin = -np.sin(ang) * hann[:, None]
    wdft = np.zeros((N_FFT, 2 * FREQ_PAD), np.float32)
    wdft[:, :N_FREQS] = w_cos
    wdft[:, FREQ_PAD:FREQ_PAD + N_FREQS] = w_sin                # (400, 512)

    fb_pad = np.zeros((FREQ_PAD, N_FILTER), np.float32)
    fb_pad[:N_FREQS] = _linear_fbanks_np()
    dct_pad = np.zeros((N_FILTER, LFCC_PAD), np.float32)
    dct_pad[:, :N_LFCC] = _create_dct_np()                      # cols >= 60 exact zero
    return (jnp.asarray(wdft, dtype=jnp.bfloat16),              # big matmul in bf16
            jnp.asarray(fb_pad, dtype=jnp.float32),             # small matmuls in f32
            jnp.asarray(dct_pad, dtype=jnp.float32))


# -----------------------------------------------------------------------------
# Pallas kernels
# -----------------------------------------------------------------------------
def _lfcc_kernel(frames_ref, wdft_ref, fb_ref, dct_ref, out_ref):
    # frames: (tile, 400) bf16.  One lane-dense dot gives re|im halves at once.
    s = jnp.dot(frames_ref[...], wdft_ref[...],
                preferred_element_type=jnp.float32)             # (tile, 512) f32
    re = s[:, :FREQ_PAD]
    im = s[:, FREQ_PAD:]
    power = re * re + im * im                                   # power=2 spectrogram
    fbank = jnp.dot(power, fb_ref[...],
                    preferred_element_type=jnp.float32)         # (tile, 128) f32
    # AmplitudeToDB("power", top_db=None, ref=1): 10*log10(clamp(x, 1e-10))
    db = 10.0 * jnp.log10(jnp.maximum(fbank, 1e-10))
    out_ref[...] = jnp.dot(db, dct_ref[...],
                           preferred_element_type=jnp.float32)  # (tile, 128) lane-dense


def _compute_deltas_time(x):
    """torchaudio.functional.compute_deltas (win=5, replicate pad) along axis 1.

    x: (Bblk, T, F).  Exact 5-tap shift-add: O(T*F) VPU work, no (T, T) matrix.
    """
    first = x[:, :1, :]
    last = x[:, -1:, :]
    xm1 = jnp.concatenate([first, x[:, :-1, :]], axis=1)        # x[t-1], replicate
    xm2 = jnp.concatenate([first, first, x[:, :-2, :]], axis=1) # x[t-2], replicate
    xp1 = jnp.concatenate([x[:, 1:, :], last], axis=1)          # x[t+1], replicate
    xp2 = jnp.concatenate([x[:, 2:, :], last, last], axis=1)    # x[t+2], replicate
    return ((xp1 - xm1) + 2.0 * (xp2 - xm2)) * 0.1


def _deltas_head_kernel(x_ref, w_ref, b_ref, out_ref):
    # x: (Bblk, T, 128) f32, lane-padded LFCC features (cols >= 60 are zeros).
    x = x_ref[...]
    d1 = _compute_deltas_time(x)                                # delta
    d2 = _compute_deltas_time(d1)                               # delta-delta
    inv_t = 1.0 / x.shape[1]
    # Stand-in head: mean pool over time of concat([x, d1, d2], -1), then linear.
    # The concat is folded into three lane-dense dots against w_ref[0/1/2].
    p0 = jnp.sum(x, axis=1) * inv_t                             # (Bblk, 128)
    p1 = jnp.sum(d1, axis=1) * inv_t
    p2 = jnp.sum(d2, axis=1) * inv_t
    logits = (jnp.dot(p0, w_ref[0], preferred_element_type=jnp.float32)
              + jnp.dot(p1, w_ref[1], preferred_element_type=jnp.float32)
              + jnp.dot(p2, w_ref[2], preferred_element_type=jnp.float32)
              + b_ref[...])                                     # (Bblk, 128) lane-dense
    out_ref[0] = logits


# -----------------------------------------------------------------------------
# pallas_call wrappers
# -----------------------------------------------------------------------------
def _pick_row_tiling(n_rows):
    """Row tile: big (up to 1024) when there is work, but always >=2 grid steps."""
    if n_rows >= 2 * MAX_ROW_TILE:
        tile = MAX_ROW_TILE
    else:
        half = -(-n_rows // 2)
        tile = min(MAX_ROW_TILE, max(16, -(-half // 16) * 16))  # bf16 sublane multiple
    r_pad = -(-n_rows // tile) * tile
    return tile, r_pad


def lfcc_rows_call(rows, wdft, fb, dct, tile):
    r_pad = rows.shape[0]
    return pl.pallas_call(
        _lfcc_kernel,
        out_shape=jax.ShapeDtypeStruct((r_pad, LFCC_PAD), jnp.float32),
        grid_spec=pltpu.PrefetchScalarGridSpec(
            num_scalar_prefetch=0,
            grid=(r_pad // tile,),
            in_specs=[
                pl.BlockSpec((tile, N_FFT), lambda i: (i, 0)),
                pl.BlockSpec((N_FFT, 2 * FREQ_PAD), lambda i: (0, 0)),
                pl.BlockSpec((FREQ_PAD, N_FILTER), lambda i: (0, 0)),
                pl.BlockSpec((N_FILTER, LFCC_PAD), lambda i: (0, 0)),
            ],
            out_specs=pl.BlockSpec((tile, LFCC_PAD), lambda i: (i, 0)),
        ),
        compiler_params=pltpu.CompilerParams(
            dimension_semantics=("parallel",),
            vmem_limit_bytes=32 * 1024 * 1024,
        ),
    )(rows, wdft, fb, dct)


def _pick_batch_tiling(b, t):
    """Batch tile for kernel 2: amortize step overhead, keep >=2 grid steps, cap VMEM."""
    in_bytes = t * LFCC_PAD * 4
    cap = max(1, (8 * 1024 * 1024) // (2 * in_bytes))           # 2x-buffered x <= ~8 MiB
    bblk = max(1, min(MAX_BATCH_TILE, cap, -(-b // 2)))
    b_pad = -(-b // bblk) * bblk
    return bblk, b_pad


def deltas_concat_head(lfcc_btf, w_head, b_head):
    """(B, T, 128) lane-padded features -> (B, N_CLASSES) logits (fused kernel 2)."""
    b, t, f = lfcc_btf.shape
    assert f == LFCC_PAD and t >= 3
    bblk, bp = _pick_batch_tiling(b, t)
    x = lfcc_btf
    if bp > b:
        x = jnp.pad(x, ((0, bp - b), (0, 0), (0, 0)))
    n_blocks = bp // bblk

    # Lane-pad head weights/bias so every kernel-2 load/matmul/store is 128 lanes wide.
    w_pad = jnp.zeros((3, LFCC_PAD, HEAD_PAD), jnp.float32)
    w_pad = w_pad.at[:, :N_LFCC, :N_CLASSES].set(w_head)
    bias_pad = jnp.zeros((1, HEAD_PAD), jnp.float32).at[:, :N_CLASSES].set(b_head)

    out = pl.pallas_call(
        _deltas_head_kernel,
        out_shape=jax.ShapeDtypeStruct((n_blocks, bblk, HEAD_PAD), jnp.float32),
        grid_spec=pltpu.PrefetchScalarGridSpec(
            num_scalar_prefetch=0,
            grid=(n_blocks,),
            in_specs=[
                pl.BlockSpec((bblk, t, LFCC_PAD), lambda i: (i, 0, 0)),
                pl.BlockSpec((3, LFCC_PAD, HEAD_PAD), lambda i: (0, 0, 0)),
                pl.BlockSpec((1, HEAD_PAD), lambda i: (0, 0)),
            ],
            out_specs=pl.BlockSpec((1, bblk, HEAD_PAD), lambda i: (i, 0, 0)),
        ),
        compiler_params=pltpu.CompilerParams(
            dimension_semantics=("parallel",),
            vmem_limit_bytes=32 * 1024 * 1024,
        ),
    )(x, w_pad, bias_pad)
    return out.reshape(bp, HEAD_PAD)[:b, :N_CLASSES]


# -----------------------------------------------------------------------------
# Forward pass (thin JAX glue around the two fused kernels)
# -----------------------------------------------------------------------------
def frame_audio(x):
    """(B, L) -> (B, T, N_FFT) bf16 frames, matching torch.stft(center, reflect).

    No gather: 50%-overlapping frames built from a (T+1, HOP) chunk view via two
    static slices + one concat, materialized directly in bf16 (half the traffic).
    """
    b, length = x.shape
    pad = N_FFT // 2
    n_frames = 1 + (length + 2 * pad - N_FFT) // HOP
    xp = jnp.pad(x, ((0, 0), (pad, pad)), mode="reflect").astype(jnp.bfloat16)
    need = (n_frames + 1) * HOP
    if xp.shape[1] < need:
        xp = jnp.pad(xp, ((0, 0), (0, need - xp.shape[1])))
    else:
        xp = xp[:, :need]
    chunks = xp.reshape(b, n_frames + 1, HOP)
    frames = jnp.concatenate([chunks[:, :n_frames], chunks[:, 1:n_frames + 1]], axis=-1)
    return frames, n_frames
    # TODO(synk): for very long waveforms, build frames inside the LFCC kernel
    # from a contiguous VMEM audio slab to read each sample only once from HBM.


def lfcc_features_padded(x):
    """torchaudio LFCC(n_lfcc=60): (B, L) -> (B, T, 128) lane-padded (cols>=60 are 0)."""
    b, _ = x.shape
    frames, n_frames = frame_audio(x)                           # (B, T, 400) bf16
    n_rows = b * n_frames
    tile, r_pad = _pick_row_tiling(n_rows)
    rows = frames.reshape(n_rows, N_FFT)
    if r_pad > n_rows:
        rows = jnp.pad(rows, ((0, r_pad - n_rows), (0, 0)))
    wdft, fb, dct = lfcc_weights()
    out = lfcc_rows_call(rows, wdft, fb, dct, tile)             # (r_pad, 128) f32
    return out[:n_rows].reshape(b, n_frames, LFCC_PAD)          # (B, T, 128)


@jax.jit
def new_lcnn56_forward(x, w_head, b_head):
    # Feature tensor is kept in (B, T, F) layout end-to-end, so the PyTorch
    # `transpose(1, 2)` is implicit and no XLA transpose is emitted; the lane
    # padding (128 cols) is kept end-to-end so both kernels stay lane-dense.
    lfcc = lfcc_features_padded(x)                              # (B, T, 128)
    # TODO(synk): the wrapped LCNN-56 `model` backbone is not defined in the
    # reference snippet; a deterministic mean-pool + linear classifier stands in.
    return deltas_concat_head(lfcc, w_head, b_head)             # (B, 2)


if __name__ == "__main__":
    key = jax.random.PRNGKey(0)
    k_x, k_w = jax.random.split(key)
    # small waveform: batch=2, 3200 samples -> 17 LFCC frames
    x = jax.random.normal(k_x, (2, 3200), dtype=jnp.float32)
    # head weight stored as (3, 60, 2): one 60x2 block per [lfcc, delta, delta2]
    w_head = (0.02 * jax.random.normal(k_w, (3, N_LFCC, N_CLASSES))).astype(jnp.float32)
    b_head = jnp.zeros((1, N_CLASSES), dtype=jnp.float32)

    out = new_lcnn56_forward(x, w_head, b_head)
    jax.block_until_ready(out)
    assert out.shape == (2, N_CLASSES) and out.dtype == jnp.float32
    assert bool(jnp.all(jnp.isfinite(out)))
    print("KERNEL_OK")
</pallas_src>

<mosaic_0001>
module attributes {stable_mosaic.version = 11 : i64} {
  func.func @_lfcc_kernel(%arg0: i32, %arg1: memref<32x400xbf16, #tpu.memory_space<vmem>>, %arg2: memref<400x512xbf16, #tpu.memory_space<vmem>>, %arg3: memref<256x128xf32, #tpu.memory_space<vmem>>, %arg4: memref<128x128xf32, #tpu.memory_space<vmem>>, %arg5: memref<32x128xf32, #tpu.memory_space<vmem>>) attributes {dimension_semantics = [#tpu.dimension_semantics<parallel>], iteration_bounds = array<i64: 2>, scalar_prefetch = 0 : i64, scratch_operands = 0 : i64, tpu.core_type = #tpu.core_type<tc>, window_params = [{transform_indices = @transform_0, window_bounds = array<i64: 32, 400>}, {pipeline_mode = #tpu.pipeline_mode<synchronous>, transform_indices = @transform_1, window_bounds = array<i64: 400, 512>}, {pipeline_mode = #tpu.pipeline_mode<synchronous>, transform_indices = @transform_2, window_bounds = array<i64: 256, 128>}, {pipeline_mode = #tpu.pipeline_mode<synchronous>, transform_indices = @transform_3, window_bounds = array<i64: 128, 128>}, {transform_indices = @transform_4, window_bounds = array<i64: 32, 128>}]} {
    %c0 = arith.constant 0 : index
    %c0_0 = arith.constant 0 : index
    %0 = vector.load %arg1[%c0, %c0_0] : memref<32x400xbf16, #tpu.memory_space<vmem>>, vector<32x400xbf16>
    %c0_1 = arith.constant 0 : index
    %c0_2 = arith.constant 0 : index
    %1 = vector.load %arg2[%c0_1, %c0_2] : memref<400x512xbf16, #tpu.memory_space<vmem>>, vector<400x512xbf16>
    %cst = arith.constant dense<0.000000e+00> : vector<32x512xf32>
    %2 = tpu.matmul %0, %1, %cst {dimension_numbers = #tpu.dot_dimension_numbers<[1], [0], [0], [1], [0, 0, 1, 1], [], []>} : vector<32x400xbf16>, vector<400x512xbf16>, vector<32x512xf32> -> vector<32x512xf32>
    %3 = vector.extract_strided_slice %2 {offsets = [0, 0], sizes = [32, 256], strides = [1, 1]} : vector<32x512xf32> to vector<32x256xf32>
    %4 = vector.extract_strided_slice %2 {offsets = [0, 256], sizes = [32, 256], strides = [1, 1]} : vector<32x512xf32> to vector<32x256xf32>
    %5 = arith.mulf %3, %3 : vector<32x256xf32>
    %6 = arith.mulf %4, %4 : vector<32x256xf32>
    %7 = arith.addf %5, %6 : vector<32x256xf32>
    %c0_3 = arith.constant 0 : index
    %c0_4 = arith.constant 0 : index
    %8 = vector.load %arg3[%c0_3, %c0_4] : memref<256x128xf32, #tpu.memory_space<vmem>>, vector<256x128xf32>
    %cst_5 = arith.constant dense<0.000000e+00> : vector<32x128xf32>
    %9 = tpu.matmul %7, %8, %cst_5 {dimension_numbers = #tpu.dot_dimension_numbers<[1], [0], [0], [1], [0, 0, 1, 1], [], []>} : vector<32x256xf32>, vector<256x128xf32>, vector<32x128xf32> -> vector<32x128xf32>
    %cst_6 = arith.constant 1.000000e-10 : f32
    %10 = vector.broadcast %cst_6 : f32 to vector<32x128xf32>
    %11 = arith.maximumf %9, %10 : vector<32x128xf32>
    %12 = math.log %11 : vector<32x128xf32>
    %cst_7 = arith.constant 0.434294492 : f32
    %13 = vector.broadcast %cst_7 : f32 to vector<32x128xf32>
    %14 = arith.mulf %12, %13 : vector<32x128xf32>
    %cst_8 = arith.constant 1.000000e+01 : f32
    %15 = vector.broadcast %cst_8 : f32 to vector<32x128xf32>
    %16 = arith.mulf %15, %14 : vector<32x128xf32>
    %c0_9 = arith.constant 0 : index
    %c0_10 = arith.constant 0 : index
    %17 = vector.load %arg4[%c0_9, %c0_10] : memref<128x128xf32, #tpu.memory_space<vmem>>, vector<128x128xf32>
    %cst_11 = arith.constant dense<0.000000e+00> : vector<32x128xf32>
    %18 = tpu.matmul %16, %17, %cst_11 {dimension_numbers = #tpu.dot_dimension_numbers<[1], [0], [0], [1], [0, 0, 1, 1], [], []>} : vector<32x128xf32>, vector<128x128xf32>, vector<32x128xf32> -> vector<32x128xf32>
    %c0_12 = arith.constant 0 : index
    %c0_13 = arith.constant 0 : index
    %19 = vector.load %arg5[%c0_12, %c0_13] : memref<32x128xf32, #tpu.memory_space<vmem>>, vector<32x128xf32>
    tpu.vector_store %arg5[%c0_12, %c0_13], %18 {strides = array<i32>} : memref<32x128xf32, #tpu.memory_space<vmem>>, vector<32x128xf32>,
    return
  }
  func.func @transform_0(%arg0: i32) -> (i32, i32) {
    %c0_i32 = arith.constant 0 : i32
    %c0_i32_0 = arith.constant 0 : i32
    return %arg0, %c0_i32 : i32, i32
  }
  func.func @transform_1(%arg0: i32) -> (i32, i32) {
    %c0_i32 = arith.constant 0 : i32
    %c0_i32_0 = arith.constant 0 : i32
    %c0_i32_1 = arith.constant 0 : i32
    return %c0_i32, %c0_i32_0 : i32, i32
  }
  func.func @transform_2(%arg0: i32) -> (i32, i32) {
    %c0_i32 = arith.constant 0 : i32
    %c0_i32_0 = arith.constant 0 : i32
    %c0_i32_1 = arith.constant 0 : i32
    return %c0_i32, %c0_i32_0 : i32, i32
  }
  func.func @transform_3(%arg0: i32) -> (i32, i32) {
    %c0_i32 = arith.constant 0 : i32
    %c0_i32_0 = arith.constant 0 : i32
    %c0_i32_1 = arith.constant 0 : i32
    return %c0_i32, %c0_i32_0 : i32, i32
  }
  func.func @transform_4(%arg0: i32) -> (i32, i32) {
    %c0_i32 = arith.constant 0 : i32
    %c0_i32_0 = arith.constant 0 : i32
    return %arg0, %c0_i32 : i32, i32
  }
}

module attributes {stable_mosaic.version = 11 : i64} {
  func.func @_deltas_head_kernel(%arg0: i32, %arg1: memref<1x17x128xf32, #tpu.memory_space<vmem>>, %arg2: memref<3x128x128xf32, #tpu.memory_space<vmem>>, %arg3: memref<1x128xf32, #tpu.memory_space<vmem>>, %arg4: memref<1x1x128xf32, #tpu.memory_space<vmem>>) attributes {dimension_semantics = [#tpu.dimension_semantics<parallel>], iteration_bounds = array<i64: 2>, scalar_prefetch = 0 : i64, scratch_operands = 0 : i64, tpu.core_type = #tpu.core_type<tc>, window_params = [{transform_indices = @transform_0, window_bounds = array<i64: 1, 17, 128>}, {pipeline_mode = #tpu.pipeline_mode<synchronous>, transform_indices = @transform_1, window_bounds = array<i64: 3, 128, 128>}, {pipeline_mode = #tpu.pipeline_mode<synchronous>, transform_indices = @transform_2, window_bounds = array<i64: 1, 128>}, {transform_indices = @transform_3, window_bounds = array<i64: 1, 1, 128>}]} {
    %c0 = arith.constant 0 : index
    %c0_0 = arith.constant 0 : index
    %c0_1 = arith.constant 0 : index
    %0 = vector.load %arg1[%c0, %c0_0, %c0_1] : memref<1x17x128xf32, #tpu.memory_space<vmem>>, vector<1x17x128xf32>
    %1 = vector.extract_strided_slice %0 {offsets = [0, 0, 0], sizes = [1, 1, 128], strides = [1, 1, 1]} : vector<1x17x128xf32> to vector<1x1x128xf32>
    %2 = vector.extract_strided_slice %0 {offsets = [0, 16, 0], sizes = [1, 1, 128], strides = [1, 1, 1]} : vector<1x17x128xf32> to vector<1x1x128xf32>
    %3 = vector.extract_strided_slice %0 {offsets = [0, 0, 0], sizes = [1, 16, 128], strides = [1, 1, 1]} : vector<1x17x128xf32> to vector<1x16x128xf32>
    %4 = tpu.concatenate %1, %3 in 1 : vector<1x1x128xf32>, vector<1x16x128xf32> -> vector<1x17x128xf32>
    %5 = vector.extract_strided_slice %0 {offsets = [0, 0, 0], sizes = [1, 15, 128], strides = [1, 1, 1]} : vector<1x17x128xf32> to vector<1x15x128xf32>
    %6 = tpu.concatenate %1, %1, %5 in 1 : vector<1x1x128xf32>, vector<1x1x128xf32>, vector<1x15x128xf32> -> vector<1x17x128xf32>
    %7 = vector.extract_strided_slice %0 {offsets = [0, 1, 0], sizes = [1, 16, 128], strides = [1, 1, 1]} : vector<1x17x128xf32> to vector<1x16x128xf32>
    %8 = tpu.concatenate %7, %2 in 1 : vector<1x16x128xf32>, vector<1x1x128xf32> -> vector<1x17x128xf32>
    %9 = vector.extract_strided_slice %0 {offsets = [0, 2, 0], sizes = [1, 15, 128], strides = [1, 1, 1]} : vector<1x17x128xf32> to vector<1x15x128xf32>
    %10 = tpu.concatenate %9, %2, %2 in 1 : vector<1x15x128xf32>, vector<1x1x128xf32>, vector<1x1x128xf32> -> vector<1x17x128xf32>
    %11 = arith.subf %8, %4 : vector<1x17x128xf32>
    %12 = arith.subf %10, %6 : vector<1x17x128xf32>
    %cst = arith.constant 2.000000e+00 : f32
    %13 = vector.broadcast %cst : f32 to vector<1x17x128xf32>
    %14 = arith.mulf %13, %12 : vector<1x17x128xf32>
    %15 = arith.addf %11, %14 : vector<1x17x128xf32>
    %cst_2 = arith.constant 1.000000e-01 : f32
    %16 = vector.broadcast %cst_2 : f32 to vector<1x17x128xf32>
    %17 = arith.mulf %15, %16 : vector<1x17x128xf32>
    %18 = vector.extract_strided_slice %17 {offsets = [0, 0, 0], sizes = [1, 1, 128], strides = [1, 1, 1]} : vector<1x17x128xf32> to vector<1x1x128xf32>
    %19 = vector.extract_strided_slice %17 {offsets = [0, 16, 0], sizes = [1, 1, 128], strides = [1, 1, 1]} : vector<1x17x128xf32> to vector<1x1x128xf32>
    %20 = vector.extract_strided_slice %17 {offsets = [0, 0, 0], sizes = [1, 16, 128], strides = [1, 1, 1]} : vector<1x17x128xf32> to vector<1x16x128xf32>
    %21 = tpu.concatenate %18, %20 in 1 : vector<1x1x128xf32>, vector<1x16x128xf32> -> vector<1x17x128xf32>
    %22 = vector.extract_strided_slice %17 {offsets = [0, 0, 0], sizes = [1, 15, 128], strides = [1, 1, 1]} : vector<1x17x128xf32> to vector<1x15x128xf32>
    %23 = tpu.concatenate %18, %18, %22 in 1 : vector<1x1x128xf32>, vector<1x1x128xf32>, vector<1x15x128xf32> -> vector<1x17x128xf32>
    %24 = vector.extract_strided_slice %17 {offsets = [0, 1, 0], sizes = [1, 16, 128], strides = [1, 1, 1]} : vector<1x17x128xf32> to vector<1x16x128xf32>
    %25 = tpu.concatenate %24, %19 in 1 : vector<1x16x128xf32>, vector<1x1x128xf32> -> vector<1x17x128xf32>
    %26 = vector.extract_strided_slice %17 {offsets = [0, 2, 0], sizes = [1, 15, 128], strides = [1, 1, 1]} : vector<1x17x128xf32> to vector<1x15x128xf32>
    %27 = tpu.concatenate %26, %19, %19 in 1 : vector<1x15x128xf32>, vector<1x1x128xf32>, vector<1x1x128xf32> -> vector<1x17x128xf32>
    %28 = arith.subf %25, %21 : vector<1x17x128xf32>
    %29 = arith.subf %27, %23 : vector<1x17x128xf32>
    %cst_3 = arith.constant 2.000000e+00 : f32
    %30 = vector.broadcast %cst_3 : f32 to vector<1x17x128xf32>
    %31 = arith.mulf %30, %29 : vector<1x17x128xf32>
    %32 = arith.addf %28, %31 : vector<1x17x128xf32>
    %cst_4 = arith.constant 1.000000e-01 : f32
    %33 = vector.broadcast %cst_4 : f32 to vector<1x17x128xf32>
    %34 = arith.mulf %32, %33 : vector<1x17x128xf32>
    %cst_5 = arith.constant dense<0.000000e+00> : vector<1x128xf32>
    %35 = vector.multi_reduction <add>, %0, %cst_5 [1] : vector<1x17x128xf32> to vector<1x128xf32>
    %cst_6 = arith.constant 0.0588235296 : f32
    %36 = vector.broadcast %cst_6 : f32 to vector<1x128xf32>
    %37 = arith.mulf %35, %36 : vector<1x128xf32>
    %cst_7 = arith.constant dense<0.000000e+00> : vector<1x128xf32>
    %38 = vector.multi_reduction <add>, %17, %cst_7 [1] : vector<1x17x128xf32> to vector<1x128xf32>
    %cst_8 = arith.constant 0.0588235296 : f32
    %39 = vector.broadcast %cst_8 : f32 to vector<1x128xf32>
    %40 = arith.mulf %38, %39 : vector<1x128xf32>
    %cst_9 = arith.constant dense<0.000000e+00> : vector<1x128xf32>
    %41 = vector.multi_reduction <add>, %34, %cst_9 [1] : vector<1x17x128xf32> to vector<1x128xf32>
    %cst_10 = arith.constant 0.0588235296 : f32
    %42 = vector.broadcast %cst_10 : f32 to vector<1x128xf32>
    %43 = arith.mulf %41, %42 : vector<1x128xf32>
    %c0_11 = arith.constant 0 : index
    %c0_12 = arith.constant 0 : index
    %c0_13 = arith.constant 0 : index
    %44 = vector.load %arg2[%c0_11, %c0_12, %c0_13] : memref<3x128x128xf32, #tpu.memory_space<vmem>>, vector<1x128x128xf32>
    %45 = vector.shape_cast %44 : vector<1x128x128xf32> to vector<128x128xf32>
    %cst_14 = arith.constant dense<0.000000e+00> : vector<1x128xf32>
    %46 = tpu.matmul %37, %45, %cst_14 {dimension_numbers = #tpu.dot_dimension_numbers<[1], [0], [0], [1], [0, 0, 1, 1], [], []>} : vector<1x128xf32>, vector<128x128xf32>, vector<1x128xf32> -> vector<1x128xf32>
    %c1 = arith.constant 1 : index
    %c0_15 = arith.constant 0 : index
    %c0_16 = arith.constant 0 : index
    %47 = vector.load %arg2[%c1, %c0_15, %c0_16] : memref<3x128x128xf32, #tpu.memory_space<vmem>>, vector<1x128x128xf32>
    %48 = vector.shape_cast %47 : vector<1x128x128xf32> to vector<128x128xf32>
    %cst_17 = arith.constant dense<0.000000e+00> : vector<1x128xf32>
    %49 = tpu.matmul %40, %48, %cst_17 {dimension_numbers = #tpu.dot_dimension_numbers<[1], [0], [0], [1], [0, 0, 1, 1], [], []>} : vector<1x128xf32>, vector<128x128xf32>, vector<1x128xf32> -> vector<1x128xf32>
    %50 = arith.addf %46, %49 : vector<1x128xf32>
    %c2 = arith.constant 2 : index
    %c0_18 = arith.constant 0 : index
    %c0_19 = arith.constant 0 : index
    %51 = vector.load %arg2[%c2, %c0_18, %c0_19] : memref<3x128x128xf32, #tpu.memory_space<vmem>>, vector<1x128x128xf32>
    %52 = vector.shape_cast %51 : vector<1x128x128xf32> to vector<128x128xf32>
    %cst_20 = arith.constant dense<0.000000e+00> : vector<1x128xf32>
    %53 = tpu.matmul %43, %52, %cst_20 {dimension_numbers = #tpu.dot_dimension_numbers<[1], [0], [0], [1], [0, 0, 1, 1], [], []>} : vector<1x128xf32>, vector<128x128xf32>, vector<1x128xf32> -> vector<1x128xf32>
    %54 = arith.addf %50, %53 : vector<1x128xf32>
    %c0_21 = arith.constant 0 : index
    %c0_22 = arith.constant 0 : index
    %55 = vector.load %arg3[%c0_21, %c0_22] : memref<1x128xf32, #tpu.memory_space<vmem>>, vector<1x128xf32>
    %56 = arith.addf %54, %55 : vector<1x128xf32>
    %c0_23 = arith.constant 0 : index
    %c0_24 = arith.constant 0 : index
    %c0_25 = arith.constant 0 : index
    %57 = vector.load %arg4[%c0_23, %c0_24, %c0_25] : memref<1x1x128xf32, #tpu.memory_space<vmem>>, vector<1x1x128xf32>
    %58 = vector.shape_cast %57 : vector<1x1x128xf32> to vector<1x128xf32>
    %59 = vector.shape_cast %56 : vector<1x128xf32> to vector<1x1x128xf32>
    tpu.vector_store %arg4[%c0_23, %c0_24, %c0_25], %59 {strides = array<i32>} : memref<1x1x128xf32, #tpu.memory_space<vmem>>, vector<1x1x128xf32>,
    return
  }
  func.func @transform_0(%arg0: i32) -> (i32, i32, i32) {
    %c0_i32 = arith.constant 0 : i32
    %c0_i32_0 = arith.constant 0 : i32
    %c0_i32_1 = arith.constant 0 : i32
    return %arg0, %c0_i32, %c0_i32_0 : i32, i32, i32
  }
  func.func @transform_1(%arg0: i32) -> (i32, i32, i32) {
    %c0_i32 = arith.constant 0 : i32
    %c0_i32_0 = arith.constant 0 : i32
    %c0_i32_1 = arith.constant 0 : i32
    %c0_i32_2 = arith.constant 0 : i32
    return %c0_i32, %c0_i32_0, %c0_i32_1 : i32, i32, i32
  }
  func.func @transform_2(%arg0: i32) -> (i32, i32) {
    %c0_i32 = arith.constant 0 : i32
    %c0_i32_0 = arith.constant 0 : i32
    %c0_i32_1 = arith.constant 0 : i32
    return %c0_i32, %c0_i32_0 : i32, i32
  }
  func.func @transform_3(%arg0: i32) -> (i32, i32, i32) {
    %c0_i32 = arith.constant 0 : i32
    %c0_i32_0 = arith.constant 0 : i32
    %c0_i32_1 = arith.constant 0 : i32
    return %arg0, %c0_i32, %c0_i32_0 : i32, i32, i32
  }
}

</mosaic_0001>

<llo_original>
// kernel: reverse
$region0: #{reverse}
  %s0 = inlined_call_operand.vmem [shape: bf16[2,256], index: 0, kind: input, shape index: {}]
  %s1 = inlined_call_operand.vmem [shape: bf16[2,256], index: 1, kind: output, shape index: {}]
  %v2 = vlaneseq
  %v3 = vsub.s32 127, %v2
  %4 = vset.pattern.permute.xlu0 %v3
  $region1: #{reverse} parent=0
    #allocation0 [shape = 'u8[4096]{0}', space=vmem, size = 0x1000, scoped, tag = 'operand span for operand 0']
    #allocation1 [shape = 'u8[1024]{0}', space=vmem, size = 0x400, scoped, tag = 'packed  for operand 0']
    #allocation2 [shape = 'u8[4096]{0}', space=vmem, size = 0x1000, scoped, tag = 'operand span for operand 1']
    #allocation3 [shape = 'u8[1024]{0}', space=vmem, size = 0x400, scoped, tag = 'packed  for operand 1']
    loop: start=0, step=1, limit=4
    $region2: #{reverse} parent=1 // loop_pre_header
      _
    $region3: #{reverse} parent=1 // loop_header
      %s6 = sphi 0, %s10
      %p7 = scmp.ge.s32.totalorder %s6, 4
      %s13 = sphi 0, %s25
      %s14 = sphi 0, %s21
      %s15 = sphi 0, %s13
      %s16 = sphi 0, %s14
      %s17 = sphi 0, %s15
      %s18 = sphi 0, %s16
    $region4: #{reverse} parent=1 // loop_header_branch
      %9 = sbr.rel (%p7) target = $region8
    $region5: #{reverse} parent=1 // loop_body
      %s11 = ssub.s32 %s6, 1
      %s12 = ssub.s32 %s6, 2
      %s19 = sadd.s32 1, %s14
      %p20 = scmp.ge.s32.totalorder %s19, 2
      %s21 = scalar_select %p20, 0, %s19
      %s22 = sadd.s32 1, %s13
      %s23 = scalar_select %p20, %s22, %s13
      %p24 = scmp.ge.s32.totalorder %s23, 1
      %s25 = scalar_select %p24, 0, %s23
      %p26 = scmp.le.s32.totalorder 1, %s6
      %p27 = scmp.lt.s32.totalorder %s6, 3
      %p28 = pnand %p26, %p27
      %p29 = pneg %p28
      // Predicated region
      $region9: #{reverse} parent=5 // pred_check
        _
      $region10: #{reverse} parent=5 // pred_check_branch
        %31 = sbr.rel (%p28) target = $region12
      $region11: #{reverse} parent=5 // pred_region
        %s32 = ssub.s32 %s6, 1
      $region12: #{reverse} parent=5 // pred_fallthru
        _
      %p33 = scmp.lt.s32.totalorder %s6, 2
      // Predicated region
      $region13: #{reverse} parent=5 // pred_check
        %p34 = pneg %p33
      $region14: #{reverse} parent=5 // pred_check_branch
        %36 = sbr.rel (%p34) target = $region16
      $region15: #{reverse} parent=5 // pred_region
        %s37 = sand.u32 %s6, 1
        %s38 = sand.u32 %s6, 1
        %s39 = scalar_lea.vmem [#allocation1], %s38
        %s40 = ssub.s32 1, %s14
        %s41 = smul.addr %s13, 2
        %s42 = sadd.s32 %s40, %s41
        %s43 = scalar_lea.vmem %s0, %s42
        // Predicated region
        $region17: #{reverse} parent=15 // pred_check
          _
        $region18: #{reverse} parent=15 // pred_check_branch
          %45 = sbr.rel (0) target = $region20
        $region19: #{reverse} parent=15 // pred_region
          // Predicated region
          $region21: #{reverse} parent=19 // pred_check
            _
          $region22: #{reverse} parent=19 // pred_check_branch
            %47 = sbr.rel target = $region24
          $region23: #{reverse} parent=19 // pred_region
            // Predicated region
            $region36: #{reverse} parent=23 // pred_check
              _
            $region37: #{reverse} parent=23 // pred_check_branch
              %63 = sbr.rel (0) target = $region39
            $region38: #{reverse} parent=23 // pred_region
              %s65 = ssub.s32 2, 1
              loop: start=0, step=1, limit=1
              $region40: #{reverse} parent=38 // loop_pre_header
                _
              $region41: #{reverse} parent=38 // loop_header
                %s67 = sphi 0, %s71
                %p68 = scmp.ge.s32.totalorder %s67, 1
                %s72 = sphi %s43, %s43
                %s73 = sphi %s39, %s39
              $region42: #{reverse} parent=38 // loop_header_branch
                %70 = sbr.rel (%p68) target = $region46
              $region43: #{reverse} parent=38 // loop_body
                %v74 = vld [vmem:[%s72] sm:%s65]
                %75 = vst [vmem:[%s73] sm:%s65] %v74
              $region44: #{reverse} parent=38 // loop_footer
                %s71 = sadd.s32 1, %s67
              $region45: #{reverse} parent=38 // loop_footer_branch
                %66 = sbr.rel target = $region41
              $region46: #{reverse} parent=38 // loop_exit
                _
            $region39: #{reverse} parent=23 // pred_fallthru
              _
          $region24: #{reverse} parent=19 // pred_fallthru
            _
          // Predicated region
          $region25: #{reverse} parent=19 // pred_check
            _
          $region26: #{reverse} parent=19 // pred_check_branch
            %49 = sbr.rel (0) target = $region28
          $region27: #{reverse} parent=19 // pred_region
            %s51 = ssub.s32 2, 1
            loop: start=0, step=1, limit=1
            $region29: #{reverse} parent=27 // loop_pre_header
              _
            $region30: #{reverse} parent=27 // loop_header
              %s53 = sphi 0, %s57
              %p54 = scmp.ge.s32.totalorder %s53, 1
              %s58 = sphi %s43, %s43
              %s59 = sphi %s39, %s39
            $region31: #{reverse} parent=27 // loop_header_branch
              %56 = sbr.rel (%p54) target = $region35
            $region32: #{reverse} parent=27 // loop_body
              %v60 = vld [vmem:[%s58] sm:%s51]
              %61 = vst [vmem:[%s59] sm:%s51] %v60
            $region33: #{reverse} parent=27 // loop_footer
              %s57 = sadd.s32 1, %s53
            $region34: #{reverse} parent=27 // loop_footer_branch
              %52 = sbr.rel target = $region30
            $region35: #{reverse} parent=27 // loop_exit
              _
          $region28: #{reverse} parent=19 // pred_fallthru
            _
        $region20: #{reverse} parent=15 // pred_fallthru
          _
        %76 = vnop
      $region16: #{reverse} parent=5 // pred_fallthru
        _
      %p77 = scmp.le.s32.totalorder 1, %s6
      %p78 = scmp.lt.s32.totalorder %s6, 3
      %p79 = pnand %p77, %p78
      %p80 = pneg %p79
      // Predicated region
      $region47: #{reverse} parent=5 // pred_check
        _
      $region48: #{reverse} parent=5 // pred_check_branch
        %82 = sbr.rel (%p79) target = $region50
      $region49: #{reverse} parent=5 // pred_region
        %s83 = ssub.s32 %s6, 1
        %s84 = sand.u32 %s11, 1
        %s85 = sand.u32 %s11, 1
        %s86 = scalar_lea.vmem [#allocation1], %s85
        %s87 = sand.u32 %s11, 1
        %s88 = sand.u32 %s11, 1
        %s89 = scalar_lea.vmem [#allocation1], %s88
        %s90 = sand.u32 %s11, 1
        %s91 = sand.u32 %s11, 1
        %s92 = scalar_lea.vmem [#allocation3], %s91
        %s94 = smul.u32 1, 2
        %s95 = sshll.u32 1, %s94
        %s96 = ssub.s32 %s95, 1
        %s97 = sshrl.u32 %s96, 1
        %s98 = sor.u32 %s96, %s97
        %s99 = sand.u32 %s98, 85
        %s100 = sshrl.u32 %s99, 1
        %s101 = sor.u32 %s99, %s100
        %s102 = sand.u32 51, %s101
        %s103 = sshrl.u32 %s102, 2
        %s104 = sor.u32 %s102, %s103
        %s105 = sand.u32 15, %s104
        %v106 = vld [vmem:[%s89] sm:%s105]
        %v107 = vunpack.c.l.bf16 %v106
        %v108 = vunpack.c.h.bf16 %v106
        %109 = vst [vmem:[#allocation0] sm:%s96] %v107
        %s110 = ssub.s32 1, %s16
        %v111 = vld [vmem:[#allocation0] sm:$0xff]
        %112 = vperm.xlu0 %4, %v111
        %v113 = vpop.permute.xlu0 %112
        %114 = vst [vmem:[#allocation2] sm:$0xff] %v113
        %s116 = smul.u32 1, 2
        %s117 = sshll.u32 1, %s116
        %s118 = ssub.s32 %s117, 1
        %s119 = sshrl.u32 %s116, 1
        %v120 = vld [vmem:[#allocation2] sm:%s118]
        %v121 = vpack.c.bf16 0.0, %v120
        %s122 = sshll.u32 1, %s119
        %s123 = ssub.s32 %s122, 1
        %124 = vst [vmem:[%s92] sm:%s123] %v121
        %s125 = sand.u32 %s11, 1
        %s126 = sand.u32 %s11, 1
        %s127 = scalar_lea.vmem [#allocation3], %s126
        %s128 = smul.addr %s15, 2
        %s129 = sadd.s32 %s16, %s128
        %s130 = scalar_lea.vmem %s1, %s129
        // Predicated region
        $region51: #{reverse} parent=49 // pred_check
          _
        $region52: #{reverse} parent=49 // pred_check_branch
          %132 = sbr.rel (0) target = $region54
        $region53: #{reverse} parent=49 // pred_region
          // Predicated region
          $region55: #{reverse} parent=53 // pred_check
            _
          $region56: #{reverse} parent=53 // pred_check_branch
            %134 = sbr.rel target = $region58
          $region57: #{reverse} parent=53 // pred_region
            // Predicated region
            $region70: #{reverse} parent=57 // pred_check
              _
            $region71: #{reverse} parent=57 // pred_check_branch
              %150 = sbr.rel (0) target = $region73
            $region72: #{reverse} parent=57 // pred_region
              %s152 = ssub.s32 2, 1
              loop: start=0, step=1, limit=1
              $region74: #{reverse} parent=72 // loop_pre_header
                _
              $region75: #{reverse} parent=72 // loop_header
                %s154 = sphi 0, %s158
                %p155 = scmp.ge.s32.totalorder %s154, 1
                %s159 = sphi %s127, %s127
                %s160 = sphi %s130, %s130
              $region76: #{reverse} parent=72 // loop_header_branch
                %157 = sbr.rel (%p155) target = $region80
              $region77: #{reverse} parent=72 // loop_body
                %v161 = vld [vmem:[%s159] sm:%s152]
                %162 = vst [vmem:[%s160] sm:%s152] %v161
              $region78: #{reverse} parent=72 // loop_footer
                %s158 = sadd.s32 1, %s154
              $region79: #{reverse} parent=72 // loop_footer_branch
                %153 = sbr.rel target = $region75
              $region80: #{reverse} parent=72 // loop_exit
                _
            $region73: #{reverse} parent=57 // pred_fallthru
              _
          $region58: #{reverse} parent=53 // pred_fallthru
            _
          // Predicated region
          $region59: #{reverse} parent=53 // pred_check
            _
          $region60: #{reverse} parent=53 // pred_check_branch
            %136 = sbr.rel (0) target = $region62
          $region61: #{reverse} parent=53 // pred_region
            %s138 = ssub.s32 2, 1
            loop: start=0, step=1, limit=1
            $region63: #{reverse} parent=61 // loop_pre_header
              _
            $region64: #{reverse} parent=61 // loop_header
              %s140 = sphi 0, %s144
              %p141 = scmp.ge.s32.totalorder %s140, 1
              %s145 = sphi %s127, %s127
              %s146 = sphi %s130, %s130
            $region65: #{reverse} parent=61 // loop_header_branch
              %143 = sbr.rel (%p141) target = $region69
            $region66: #{reverse} parent=61 // loop_body
              %v147 = vld [vmem:[%s145] sm:%s138]
              %148 = vst [vmem:[%s146] sm:%s138] %v147
            $region67: #{reverse} parent=61 // loop_footer
              %s144 = sadd.s32 1, %s140
            $region68: #{reverse} parent=61 // loop_footer_branch
              %139 = sbr.rel target = $region64
            $region69: #{reverse} parent=61 // loop_exit
              _
          $region62: #{reverse} parent=53 // pred_fallthru
            _
        $region54: #{reverse} parent=49 // pred_fallthru
          _
        %163 = vnop
      $region50: #{reverse} parent=5 // pred_fallthru
        _
      %p164 = scmp.le.s32.totalorder 2, %s6
      // Predicated region
      $region81: #{reverse} parent=5 // pred_check
        %p165 = pneg %p164
      $region82: #{reverse} parent=5 // pred_check_branch
        %167 = sbr.rel (%p165) target = $region84
      $region83: #{reverse} parent=5 // pred_region
        %s168 = ssub.s32 %s6, 2
        %s169 = sand.u32 %s12, 1
        %s170 = sand.u32 %s12, 1
        %s171 = scalar_lea.vmem [#allocation3], %s170
      $region84: #{reverse} parent=5 // pred_fallthru
        _
    $region6: #{reverse} parent=1 // loop_footer
      %s10 = sadd.s32 1, %s6
    $region7: #{reverse} parent=1 // loop_footer_branch
      %5 = sbr.rel target = $region3
    $region8: #{reverse} parent=1 // loop_exit
      _

// kernel: new_lcnn56_forward.3
$region0: #{new_lcnn56_forward.3}
  #allocation0 [shape = 'u32[]', space=smem, size = 0x4, offset = 0x4, fixed_abs, tag = 'smem constant byte address 0x4 - core index']
  #allocation1 [shape = 'u32[144,128]{1,0:T(1,128)}', space=vmem, size = 0x12000, scoped, tag = 'internal scratch']
  %s0 = inlined_call_operand.vmem [shape: f32[2,17,128], index: 0, kind: input, shape index: {}]
  %s1 = inlined_call_operand.vmem [shape: f32[3,128,128], index: 1, kind: input, shape index: {}]
  %s2 = inlined_call_operand.vmem [shape: f32[1,128], index: 2, kind: input, shape index: {}]
  %s3 = inlined_call_operand.hbm [shape: f32[2,1,128], index: 3, kind: output, shape index: {}]
  %s4 = sld [smem:[#allocation0]]
  $region45: #{new_lcnn56_forward.3} parent=0
    _
  %s6 = ssub.s32 1, %s4
  %s7 = scalar_select 0, %s6, %s4
  $region1: #{new_lcnn56_forward.3} parent=0
    #allocation2 [shape = 'u8[1024]{0}', space=vmem, size = 0x400, scoped, tag = 'output window, operand 0']
    #allocation3 [shape = 's32[2]{0}', space=sflag, size = 0x8, scoped, tag = 'scoped memory for new_lcnn56_forward.3']
    %8 = vsyncpa [#allocation3], 0
    %s9 = scalar_lea.sflag [#allocation3], 1
    %10 = vsyncpa %s9, 0
    loop: start=0, step=1, limit=4
    $region2: #{new_lcnn56_forward.3} parent=1 // loop_pre_header
      _
    $region3: #{new_lcnn56_forward.3} parent=1 // loop_header
      %s12 = sphi 0, %s16
      %p13 = scmp.ge.s32.totalorder %s12, 4
      %s22 = sphi 0, %s24
      %s25 = sphi 0, %s22
      %s26 = sphi 0, %s25
      %s42 = sphi 0, %s26
      %s46 = sphi 0, %s46
      %s48 = sphi 0, %s46
      %s49 = sphi 0, %s48
      %s63 = sphi 0, %s49
      %s67 = sphi 0, %s67
      %s69 = sphi 0, %s67
      %s70 = sphi 0, %s69
      %s84 = sphi 0, %s70
      %s90 = sphi 0, %s92
      %s93 = sphi 0, %s90
      %s94 = sphi 0, %s93
      %s110 = sphi 0, %s94
    $region4: #{new_lcnn56_forward.3} parent=1 // loop_header_branch
      %15 = sbr.rel (%p13) target = $region8
    $region5: #{new_lcnn56_forward.3} parent=1 // loop_body
      %s17 = ssub.s32 %s12, 1
      %s18 = ssub.s32 %s12, 2
      %s19 = sadd.s32 %s12, 1
      %s20 = ssub.s32 %s12, %s19
      %p21 = scmp.eq.s32.totalorder %s20, 0
      %s23 = sadd.s32 %s22, 1
      %s24 = scalar_select %p21, %s22, %s23
      %p27 = pneg %p21
      %p28 = scmp.eq.s32.totalorder %s12, 1
      %p29 = por %p27, %p28
      %p30 = scmp.ne.s32.totalorder %s22, %s25
      %p31 = scmp.eq.s32.totalorder %s12, 0
      %p32 = por %p30, %p31
      %p33 = scmp.ne.s32.totalorder %s22, %s25
      %p34 = scmp.eq.s32.totalorder %s17, 1
      %p35 = por %p33, %p34
      %p36 = scmp.ne.s32.totalorder %s25, %s26
      %p37 = scmp.eq.s32.totalorder %s17, 0
      %p38 = por %p36, %p37
      %p39 = scmp.ne.s32.totalorder %s25, %s26
      %p40 = scmp.eq.s32.totalorder %s18, 1
      %p41 = por %p39, %p40
      %p43 = scmp.ne.s32.totalorder %s26, %s42
      %p44 = scmp.eq.s32.totalorder %s18, 0
      %p45 = por %p43, %p44
      %s47 = sadd.s32 %s46, 1
      %p50 = scmp.eq.s32.totalorder %s12, 1
      %p51 = scmp.ne.s32.totalorder %s46, %s48
      %p52 = scmp.eq.s32.totalorder %s12, 0
      %p53 = por %p51, %p52
      %p54 = scmp.ne.s32.totalorder %s46, %s48
      %p55 = scmp.eq.s32.totalorder %s17, 1
      %p56 = por %p54, %p55
      %p57 = scmp.ne.s32.totalorder %s48, %s49
      %p58 = scmp.eq.s32.totalorder %s17, 0
      %p59 = por %p57, %p58
      %p60 = scmp.ne.s32.totalorder %s48, %s49
      %p61 = scmp.eq.s32.totalorder %s18, 1
      %p62 = por %p60, %p61
      %p64 = scmp.ne.s32.totalorder %s49, %s63
      %p65 = scmp.eq.s32.totalorder %s18, 0
      %p66 = por %p64, %p65
      %s68 = sadd.s32 %s67, 1
      %p71 = scmp.eq.s32.totalorder %s12, 1
      %p72 = scmp.ne.s32.totalorder %s67, %s69
      %p73 = scmp.eq.s32.totalorder %s12, 0
      %p74 = por %p72, %p73
      %p75 = scmp.ne.s32.totalorder %s67, %s69
      %p76 = scmp.eq.s32.totalorder %s17, 1
      %p77 = por %p75, %p76
      %p78 = scmp.ne.s32.totalorder %s69, %s70
      %p79 = scmp.eq.s32.totalorder %s17, 0
      %p80 = por %p78, %p79
      %p81 = scmp.ne.s32.totalorder %s69, %s70
      %p82 = scmp.eq.s32.totalorder %s18, 1
      %p83 = por %p81, %p82
      %p85 = scmp.ne.s32.totalorder %s70, %s84
      %p86 = scmp.eq.s32.totalorder %s18, 0
      %p87 = por %p85, %p86
      %s88 = ssub.s32 %s12, %s19
      %p89 = scmp.eq.s32.totalorder %s88, 0
      %s91 = sadd.s32 %s90, 1
      %s92 = scalar_select %p89, %s90, %s91
      %p95 = pneg %p89
      %p96 = scmp.eq.s32.totalorder %s12, 1
      %p97 = por %p95, %p96
      %p98 = scmp.ne.s32.totalorder %s90, %s93
      %p99 = scmp.eq.s32.totalorder %s12, 0
      %p100 = por %p98, %p99
      %p101 = scmp.ne.s32.totalorder %s90, %s93
      %p102 = scmp.eq.s32.totalorder %s17, 1
      %p103 = por %p101, %p102
      %p104 = scmp.ne.s32.totalorder %s93, %s94
      %p105 = scmp.eq.s32.totalorder %s17, 0
      %p106 = por %p104, %p105
      %p107 = scmp.ne.s32.totalorder %s93, %s94
      %p108 = scmp.eq.s32.totalorder %s18, 1
      %p109 = por %p107, %p108
      %p111 = scmp.ne.s32.totalorder %s94, %s110
      %p112 = scmp.eq.s32.totalorder %s18, 0
      %p113 = por %p111, %p112
      %p114 = scmp.le.s32.totalorder 1, %s12
      %p115 = scmp.lt.s32.totalorder %s12, 3
      %p116 = pnand %p114, %p115
      %p117 = pneg %p116
      // Predicated region
      $region9: #{new_lcnn56_forward.3} parent=5 // pred_check
        _
      $region10: #{new_lcnn56_forward.3} parent=5 // pred_check_branch
        %119 = sbr.rel (%p116) target = $region12
      $region11: #{new_lcnn56_forward.3} parent=5 // pred_region
        %s120 = ssub.s32 %s12, 1
        // Predicated region
        $region13: #{new_lcnn56_forward.3} parent=11 // pred_check
          %p121 = pneg %p59
        $region14: #{new_lcnn56_forward.3} parent=11 // pred_check_branch
          %123 = sbr.rel (%p121) target = $region16
        $region15: #{new_lcnn56_forward.3} parent=11 // pred_region
          _
        $region16: #{new_lcnn56_forward.3} parent=11 // pred_fallthru
          _
        // Predicated region
        $region17: #{new_lcnn56_forward.3} parent=11 // pred_check
          %p124 = pneg %p80
        $region18: #{new_lcnn56_forward.3} parent=11 // pred_check_branch
          %126 = sbr.rel (%p124) target = $region20
        $region19: #{new_lcnn56_forward.3} parent=11 // pred_region
          _
        $region20: #{new_lcnn56_forward.3} parent=11 // pred_fallthru
          _
      $region12: #{new_lcnn56_forward.3} parent=5 // pred_fallthru
        _
      %p127 = scmp.lt.s32.totalorder %s12, 2
      // Predicated region
      $region21: #{new_lcnn56_forward.3} parent=5 // pred_check
        %p128 = pneg %p127
      $region22: #{new_lcnn56_forward.3} parent=5 // pred_check_branch
        %130 = sbr.rel (%p128) target = $region24
      $region23: #{new_lcnn56_forward.3} parent=5 // pred_region
        // Predicated region
        $region25: #{new_lcnn56_forward.3} parent=23 // pred_check
          %p131 = pneg %p32
        $region26: #{new_lcnn56_forward.3} parent=23 // pred_check_branch
          %133 = sbr.rel (%p131) target = $region28
        $region27: #{new_lcnn56_forward.3} parent=23 // pred_region
          %p134 = scmp.lt.s32.totalorder %s12, 1
          %s135 = scalar_select %p134, %s12, 1
          %s136 = smul.addr %s135, 3
          %s137 = smul.addr %s136, 8
          %s138 = scalar_lea.vmem %s0, %s137
        $region28: #{new_lcnn56_forward.3} parent=23 // pred_fallthru
          _
      $region24: #{new_lcnn56_forward.3} parent=5 // pred_fallthru
        _
      %p139 = scmp.le.s32.totalorder 1, %s12
      %p140 = scmp.lt.s32.totalorder %s12, 3
      %p141 = pnand %p139, %p140
      %p142 = pneg %p141
      // Predicated region
      $region29: #{new_lcnn56_forward.3} parent=5 // pred_check
        _
      $region30: #{new_lcnn56_forward.3} parent=5 // pred_check_branch
        %144 = sbr.rel (%p141) target = $region32
      $region31: #{new_lcnn56_forward.3} parent=5 // pred_region
        %s145 = ssub.s32 %s12, 1
        %p146 = scmp.lt.s32.totalorder %s17, 1
        %s147 = scalar_select %p146, %s17, 1
        %s148 = smul.addr %s147, 3
        %s149 = smul.addr %s148, 8
        %s150 = scalar_lea.vmem %s0, %s149
        %p151 = pneg %p38
        %p152 = pneg %p35
        %p153 = pneg %p59
        %p154 = pneg %p56
        %p155 = pneg %p80
        %p156 = pneg %p77
        %p157 = pneg %p106
        %p158 = pneg %p103
        %s159 = sand.u32 %s93, 1
        %s160 = scalar_lea.sflag [#allocation3], %s159
        %s161 = sand.u32 %s93, 1
        %s162 = scalar_lea.vmem [#allocation2], %s161
        %p163 = scmp.lt.s32.totalorder %s17, 1
        %s164 = scalar_select %p163, %s17, 1
        %s165 = smul.addr %s164, 3
        %s166 = smul.addr %s165, 8
        %s167 = scalar_lea.vmem %s0, %s166
        %v168 = vld [vmem:[%s167] sm:$0xff]
        %v169 = vld [vmem:[%s167 + $0x8] sm:$0xff]
        %v170 = vld [vmem:[%s167 + $0x10] sm:$0x1]
        %vm173 = vcmask 1040384
        %v174 = vrot.slane %v168, 7
        %v175 = vrot.slane %v169, 7
        %v176 = vsel %vm173, %v174, %v175
        %v180 = vsel %vm173, %v168, %v174
        %vm181 = vcmask 1041408
        %v182 = vrot.slane %v168, 6
        %v183 = vrot.slane %v169, 6
        %v184 = vsel %vm181, %v182, %v183
        %v188 = vsel %vm181, %v180, %v182
        %vm190 = vcmask 1046528
        %v191 = vrot.slane %v168, 1
        %v192 = vrot.slane %v169, 1
        %v193 = vsel %vm190, %v191, %v192
        %v194 = vrot.slane %v170, 1
        %v195 = vsel %vm190, %v192, %v194
        %vm198 = vcmask 1045504
        %v199 = vrot.slane %v168, 2
        %v200 = vrot.slane %v169, 2
        %v201 = vsel %vm198, %v199, %v200
        %v202 = vrot.slane %v170, 2
        %v203 = vsel %vm198, %v200, %v202
        %v207 = vsel %vm190, %v203, %v194
        %v208 = vsub.f32 %v193, %v180
        %v209 = vsub.f32 %v195, %v176
        %v210 = vsub.f32 %v170, %v175
        %v211 = vsub.f32 %v201, %v188
        %v212 = vsub.f32 %v207, %v184
        %v213 = vsub.f32 %v170, %v183
        %v214 = vmul.f32 %v211, 2.0
        %v215 = vmul.f32 %v212, 2.0
        %v216 = vmul.f32 %v213, 2.0
        %v217 = vadd.f32 %v208, %v214
        %v218 = vadd.f32 %v209, %v215
        %v219 = vadd.f32 %v210, %v216
        %v220 = vmul.f32 %v217, 0.1
        %v221 = vmul.f32 %v218, 0.1
        %v222 = vmul.f32 %v219, 0.1
        %v225 = vrot.slane %v220, 7
        %v226 = vrot.slane %v221, 7
        %v227 = vsel %vm173, %v225, %v226
        %v231 = vsel %vm173, %v220, %v225
        %v232 = vrot.slane %v220, 6
        %v233 = vrot.slane %v221, 6
        %v234 = vsel %vm181, %v232, %v233
        %v238 = vsel %vm181, %v231, %v232
        %v240 = vrot.slane %v220, 1
        %v241 = vrot.slane %v221, 1
        %v242 = vsel %vm190, %v240, %v241
        %v243 = vrot.slane %v222, 1
        %v244 = vsel %vm190, %v241, %v243
        %v247 = vrot.slane %v220, 2
        %v248 = vrot.slane %v221, 2
        %v249 = vsel %vm198, %v247, %v248
        %v250 = vrot.slane %v222, 2
        %v251 = vsel %vm198, %v248, %v250
        %v255 = vsel %vm190, %v251, %v243
        %v256 = vsub.f32 %v242, %v231
        %v257 = vsub.f32 %v244, %v227
        %v258 = vsub.f32 %v222, %v226
        %v259 = vsub.f32 %v249, %v238
        %v260 = vsub.f32 %v255, %v234
        %v261 = vsub.f32 %v222, %v233
        %v262 = vmul.f32 %v259, 2.0
        %v263 = vmul.f32 %v260, 2.0
        %v264 = vmul.f32 %v261, 2.0
        %v265 = vadd.f32 %v256, %v262
        %v266 = vadd.f32 %v257, %v263
        %v267 = vadd.f32 %v258, %v264
        %v268 = vmul.f32 %v265, 0.1
        %v269 = vmul.f32 %v266, 0.1
        %v270 = vmul.f32 %v267, 0.1
        %v271 = vadd.f32 %v168, %v169
        %v272 = vsel %vm173, %v170, 0.0
        %v273 = vadd.f32 %v271, %v272
        %v274 = vrot.slane %v273, 4
        %v275 = vadd.f32 %v273, %v274
        %v276 = vrot.slane %v275, 2
        %v277 = vadd.f32 %v275, %v276
        %v278 = vrot.slane %v277, 1
        %v279 = vadd.f32 %v277, %v278
        %v280 = vmul.f32 %v279, 0.05882353
        %v281 = vadd.f32 %v220, %v221
        %v282 = vsel %vm173, %v222, 0.0
        %v283 = vadd.f32 %v281, %v282
        %v284 = vrot.slane %v283, 4
        %v285 = vadd.f32 %v283, %v284
        %v286 = vrot.slane %v285, 2
        %v287 = vadd.f32 %v285, %v286
        %v288 = vrot.slane %v287, 1
        %v289 = vadd.f32 %v287, %v288
        %v290 = vmul.f32 %v289, 0.05882353
        %v291 = vadd.f32 %v268, %v269
        %v292 = vsel %vm173, %v270, 0.0
        %v293 = vadd.f32 %v291, %v292
        %v294 = vrot.slane %v293, 4
        %v295 = vadd.f32 %v293, %v294
        %v296 = vrot.slane %v295, 2
        %v297 = vadd.f32 %v295, %v296
        %v298 = vrot.slane %v297, 1
        %v299 = vadd.f32 %v297, %v298
        %v300 = vmul.f32 %v299, 0.05882353
        %v301 = vld [vmem:[%s1] sm:$0xff]
        %v302 = vld [vmem:[%s1 + $0x8] sm:$0xff]
        %v303 = vld [vmem:[%s1 + $0x10] sm:$0xff]
        %v304 = vld [vmem:[%s1 + $0x18] sm:$0xff]
        %v305 = vld [vmem:[%s1 + $0x20] sm:$0xff]
        %v306 = vld [vmem:[%s1 + $0x28] sm:$0xff]
        %v307 = vld [vmem:[%s1 + $0x30] sm:$0xff]
        %v308 = vld [vmem:[%s1 + $0x38] sm:$0xff]
        %v309 = vld [vmem:[%s1 + $0x40] sm:$0xff]
        %v310 = vld [vmem:[%s1 + $0x48] sm:$0xff]
        %v311 = vld [vmem:[%s1 + $0x50] sm:$0xff]
        %v312 = vld [vmem:[%s1 + $0x58] sm:$0xff]
        %v313 = vld [vmem:[%s1 + $0x60] sm:$0xff]
        %v314 = vld [vmem:[%s1 + $0x68] sm:$0xff]
        %v315 = vld [vmem:[%s1 + $0x70] sm:$0xff]
        %v316 = vld [vmem:[%s1 + $0x78] sm:$0xff]
        %s317 = scalar_lea.vmem %s1, 128
        %v318 = vld [vmem:[%s317] sm:$0xff]
        %v319 = vld [vmem:[%s317 + $0x8] sm:$0xff]
        %v320 = vld [vmem:[%s317 + $0x10] sm:$0xff]
        %v321 = vld [vmem:[%s317 + $0x18] sm:$0xff]
        %v322 = vld [vmem:[%s317 + $0x20] sm:$0xff]
        %v323 = vld [vmem:[%s317 + $0x28] sm:$0xff]
        %v324 = vld [vmem:[%s317 + $0x30] sm:$0xff]
        %v325 = vld [vmem:[%s317 + $0x38] sm:$0xff]
        %v326 = vld [vmem:[%s317 + $0x40] sm:$0xff]
        %v327 = vld [vmem:[%s317 + $0x48] sm:$0xff]
        %v328 = vld [vmem:[%s317 + $0x50] sm:$0xff]
        %v329 = vld [vmem:[%s317 + $0x58] sm:$0xff]
        %v330 = vld [vmem:[%s317 + $0x60] sm:$0xff]
        %v331 = vld [vmem:[%s317 + $0x68] sm:$0xff]
        %v332 = vld [vmem:[%s317 + $0x70] sm:$0xff]
        %v333 = vld [vmem:[%s317 + $0x78] sm:$0xff]
        %334 = vmatprep.subr.mxu0 0.0
        %335 = vmatpush1.msra.mxu0 %v333
        %336 = vmatprep.subr.mxu0 0.0
        %337 = vmatpush1.msra.mxu0 %v332
        %338 = vmatprep.subr.mxu0 0.0
        %339 = vmatpush1.msra.mxu0 %v331
        %340 = vmatprep.subr.mxu0 0.0
        %341 = vmatpush1.msra.mxu0 %v330
        %342 = vmatprep.subr.mxu0 0.0
        %343 = vmatpush1.msra.mxu0 %v329
        %344 = vmatprep.subr.mxu0 0.0
        %345 = vmatpush1.msra.mxu0 %v328
        %346 = vmatprep.subr.mxu0 0.0
        %347 = vmatpush1.msra.mxu0 %v327
        %348 = vmatprep.subr.mxu0 0.0
        %349 = vmatpush1.msra.mxu0 %v326
        %350 = vmatprep.subr.mxu0 0.0
        %351 = vmatpush1.msra.mxu0 %v325
        %352 = vmatprep.subr.mxu0 0.0
        %353 = vmatpush1.msra.mxu0 %v324
        %354 = vmatprep.subr.mxu0 0.0
        %355 = vmatpush1.msra.mxu0 %v323
        %356 = vmatprep.subr.mxu0 0.0
        %357 = vmatpush1.msra.mxu0 %v322
        %358 = vmatprep.subr.mxu0 0.0
        %359 = vmatpush1.msra.mxu0 %v321
        %360 = vmatprep.subr.mxu0 0.0
        %361 = vmatpush1.msra.mxu0 %v320
        %362 = vmatprep.subr.mxu0 0.0
        %363 = vmatpush1.msra.mxu0 %v319
        %364 = vmatprep.subr.mxu0 0.0
        %365 = vmatpush1.msra.mxu0 %v318
        %366 = vmatprep.subr.mxu0 0.0
        %367 = vmatpush2.msra.mxu0 0.0
        %368 = vmatprep.subr.mxu0 0.0
        %369 = vmatpush2.msra.mxu0 0.0
        %370 = vmatprep.subr.mxu0 0.0
        %371 = vmatpush2.msra.mxu0 0.0
        %372 = vmatprep.subr.mxu0 0.0
        %373 = vmatpush2.msra.mxu0 0.0
        %374 = vmatprep.subr.mxu0 0.0
        %375 = vmatpush2.msra.mxu0 0.0
        %376 = vmatprep.subr.mxu0 0.0
        %377 = vmatpush2.msra.mxu0 0.0
        %378 = vmatprep.subr.mxu0 0.0
        %379 = vmatpush2.msra.mxu0 0.0
        %380 = vmatprep.subr.mxu0 0.0
        %381 = vmatpush2.msra.mxu0 0.0
        %382 = vmatprep.subr.mxu0 0.0
        %383 = vmatpush2.msra.mxu0 0.0
        %384 = vmatprep.subr.mxu0 0.0
        %385 = vmatpush2.msra.mxu0 0.0
        %386 = vmatprep.subr.mxu0 0.0
        %387 = vmatpush2.msra.mxu0 0.0
        %388 = vmatprep.subr.mxu0 0.0
        %389 = vmatpush2.msra.mxu0 0.0
        %390 = vmatprep.subr.mxu0 0.0
        %391 = vmatpush2.msra.mxu0 0.0
        %392 = vmatprep.subr.mxu0 0.0
        %393 = vmatpush2.msra.mxu0 0.0
        %394 = vmatprep.subr.mxu0 0.0
        %395 = vmatpush2.msra.mxu0 0.0
        %396 = vmatprep.subr.mxu0 0.0
        %397 = vmatpush2.msra.mxu0 0.0
        %398 = vmatprep.mubr.f32.mxu0 0.0
        %399 = vmatmul.mubr.f32.gmra.mxu0 %v290
        %v400 = vpop.f32.mrf.mxu0
        %v401 = vadd.f32 0.0, %v400
        %v402 = vpop.f32.mrf.mxu0
        %403 = vdwg.mxu0
        %404 = vmatprep.subr.mxu0 0.0
        %405 = vmatpush1.msra.mxu0 %v316
        %406 = vmatprep.subr.mxu0 0.0
        %407 = vmatpush1.msra.mxu0 %v315
        %408 = vmatprep.subr.mxu0 0.0
        %409 = vmatpush1.msra.mxu0 %v314
        %410 = vmatprep.subr.mxu0 0.0
        %411 = vmatpush1.msra.mxu0 %v313
        %412 = vmatprep.subr.mxu0 0.0
        %413 = vmatpush1.msra.mxu0 %v312
        %414 = vmatprep.subr.mxu0 0.0
        %415 = vmatpush1.msra.mxu0 %v311
        %416 = vmatprep.subr.mxu0 0.0
        %417 = vmatpush1.msra.mxu0 %v310
        %418 = vmatprep.subr.mxu0 0.0
        %419 = vmatpush1.msra.mxu0 %v309
        %420 = vmatprep.subr.mxu0 0.0
        %421 = vmatpush1.msra.mxu0 %v308
        %422 = vmatprep.subr.mxu0 0.0
        %423 = vmatpush1.msra.mxu0 %v307
        %424 = vmatprep.subr.mxu0 0.0
        %425 = vmatpush1.msra.mxu0 %v306
        %426 = vmatprep.subr.mxu0 0.0
        %427 = vmatpush1.msra.mxu0 %v305
        %428 = vmatprep.subr.mxu0 0.0
        %429 = vmatpush1.msra.mxu0 %v304
        %430 = vmatprep.subr.mxu0 0.0
        %431 = vmatpush1.msra.mxu0 %v303
        %432 = vmatprep.subr.mxu0 0.0
        %433 = vmatpush1.msra.mxu0 %v302
        %434 = vmatprep.subr.mxu0 0.0
        %435 = vmatpush1.msra.mxu0 %v301
        %436 = vmatprep.subr.mxu0 0.0
        %437 = vmatpush2.msra.mxu0 0.0
        %438 = vmatprep.subr.mxu0 0.0
        %439 = vmatpush2.msra.mxu0 0.0
        %440 = vmatprep.subr.mxu0 0.0
        %441 = vmatpush2.msra.mxu0 0.0
        %442 = vmatprep.subr.mxu0 0.0
        %443 = vmatpush2.msra.mxu0 0.0
        %444 = vmatprep.subr.mxu0 0.0
        %445 = vmatpush2.msra.mxu0 0.0
        %446 = vmatprep.subr.mxu0 0.0
        %447 = vmatpush2.msra.mxu0 0.0
        %448 = vmatprep.subr.mxu0 0.0
        %449 = vmatpush2.msra.mxu0 0.0
        %450 = vmatprep.subr.mxu0 0.0
        %451 = vmatpush2.msra.mxu0 0.0
        %452 = vmatprep.subr.mxu0 0.0
        %453 = vmatpush2.msra.mxu0 0.0
        %454 = vmatprep.subr.mxu0 0.0
        %455 = vmatpush2.msra.mxu0 0.0
        %456 = vmatprep.subr.mxu0 0.0
        %457 = vmatpush2.msra.mxu0 0.0
        %458 = vmatprep.subr.mxu0 0.0
        %459 = vmatpush2.msra.mxu0 0.0
        %460 = vmatprep.subr.mxu0 0.0
        %461 = vmatpush2.msra.mxu0 0.0
        %462 = vmatprep.subr.mxu0 0.0
        %463 = vmatpush2.msra.mxu0 0.0
        %464 = vmatprep.subr.mxu0 0.0
        %465 = vmatpush2.msra.mxu0 0.0
        %466 = vmatprep.subr.mxu0 0.0
        %467 = vmatpush2.msra.mxu0 0.0
        %468 = vmatprep.mubr.f32.mxu0 0.0
        %469 = vmatmul.mubr.f32.gmra.mxu0 %v280
        %v470 = vpop.f32.mrf.mxu0
        %v471 = vadd.f32 %v401, %v470
        %v472 = vpop.f32.mrf.mxu0
        %473 = vdwg.mxu0
        %s474 = scalar_lea.vmem %s1, 256
        %v475 = vld [vmem:[%s474] sm:$0xff]
        %v476 = vld [vmem:[%s474 + $0x8] sm:$0xff]
        %v477 = vld [vmem:[%s474 + $0x10] sm:$0xff]
        %v478 = vld [vmem:[%s474 + $0x18] sm:$0xff]
        %v479 = vld [vmem:[%s474 + $0x20] sm:$0xff]
        %v480 = vld [vmem:[%s474 + $0x28] sm:$0xff]
        %v481 = vld [vmem:[%s474 + $0x30] sm:$0xff]
        %v482 = vld [vmem:[%s474 + $0x38] sm:$0xff]
        %v483 = vld [vmem:[%s474 + $0x40] sm:$0xff]
        %v484 = vld [vmem:[%s474 + $0x48] sm:$0xff]
        %v485 = vld [vmem:[%s474 + $0x50] sm:$0xff]
        %v486 = vld [vmem:[%s474 + $0x58] sm:$0xff]
        %v487 = vld [vmem:[%s474 + $0x60] sm:$0xff]
        %v488 = vld [vmem:[%s474 + $0x68] sm:$0xff]
        %v489 = vld [vmem:[%s474 + $0x70] sm:$0xff]
        %v490 = vld [vmem:[%s474 + $0x78] sm:$0xff]
        %491 = vmatprep.subr.mxu0 0.0
        %492 = vmatpush1.msra.mxu0 %v490
        %493 = vmatprep.subr.mxu0 0.0
        %494 = vmatpush1.msra.mxu0 %v489
        %495 = vmatprep.subr.mxu0 0.0
        %496 = vmatpush1.msra.mxu0 %v488
        %497 = vmatprep.subr.mxu0 0.0
        %498 = vmatpush1.msra.mxu0 %v487
        %499 = vmatprep.subr.mxu0 0.0
        %500 = vmatpush1.msra.mxu0 %v486
        %501 = vmatprep.subr.mxu0 0.0
        %502 = vmatpush1.msra.mxu0 %v485
        %503 = vmatprep.subr.mxu0 0.0
        %504 = vmatpush1.msra.mxu0 %v484
        %505 = vmatprep.subr.mxu0 0.0
        %506 = vmatpush1.msra.mxu0 %v483
        %507 = vmatprep.subr.mxu0 0.0
        %508 = vmatpush1.msra.mxu0 %v482
        %509 = vmatprep.subr.mxu0 0.0
        %510 = vmatpush1.msra.mxu0 %v481
        %511 = vmatprep.subr.mxu0 0.0
        %512 = vmatpush1.msra.mxu0 %v480
        %513 = vmatprep.subr.mxu0 0.0
        %514 = vmatpush1.msra.mxu0 %v479
        %515 = vmatprep.subr.mxu0 0.0
        %516 = vmatpush1.msra.mxu0 %v478
        %517 = vmatprep.subr.mxu0 0.0
        %518 = vmatpush1.msra.mxu0 %v477
        %519 = vmatprep.subr.mxu0 0.0
        %520 = vmatpush1.msra.mxu0 %v476
        %521 = vmatprep.subr.mxu0 0.0
        %522 = vmatpush1.msra.mxu0 %v475
        %523 = vmatprep.subr.mxu0 0.0
        %524 = vmatpush2.msra.mxu0 0.0
        %525 = vmatprep.subr.mxu0 0.0
        %526 = vmatpush2.msra.mxu0 0.0
        %527 = vmatprep.subr.mxu0 0.0
        %528 = vmatpush2.msra.mxu0 0.0
        %529 = vmatprep.subr.mxu0 0.0
        %530 = vmatpush2.msra.mxu0 0.0
        %531 = vmatprep.subr.mxu0 0.0
        %532 = vmatpush2.msra.mxu0 0.0
        %533 = vmatprep.subr.mxu0 0.0
        %534 = vmatpush2.msra.mxu0 0.0
        %535 = vmatprep.subr.mxu0 0.0
        %536 = vmatpush2.msra.mxu0 0.0
        %537 = vmatprep.subr.mxu0 0.0
        %538 = vmatpush2.msra.mxu0 0.0
        %539 = vmatprep.subr.mxu0 0.0
        %540 = vmatpush2.msra.mxu0 0.0
        %541 = vmatprep.subr.mxu0 0.0
        %542 = vmatpush2.msra.mxu0 0.0
        %543 = vmatprep.subr.mxu0 0.0
        %544 = vmatpush2.msra.mxu0 0.0
        %545 = vmatprep.subr.mxu0 0.0
        %546 = vmatpush2.msra.mxu0 0.0
        %547 = vmatprep.subr.mxu0 0.0
        %548 = vmatpush2.msra.mxu0 0.0
        %549 = vmatprep.subr.mxu0 0.0
        %550 = vmatpush2.msra.mxu0 0.0
        %551 = vmatprep.subr.mxu0 0.0
        %552 = vmatpush2.msra.mxu0 0.0
        %553 = vmatprep.subr.mxu0 0.0
        %554 = vmatpush2.msra.mxu0 0.0
        %555 = vmatprep.mubr.f32.mxu0 0.0
        %556 = vmatmul.mubr.f32.gmra.mxu0 %v300
        %v557 = vpop.f32.mrf.mxu0
        %v558 = vadd.f32 0.0, %v557
        %v559 = vpop.f32.mrf.mxu0
        %560 = vdwg.mxu0
        %v561 = vadd.f32 %v471, %v558
        %v562 = vld [vmem:[%s2] sm:$0x1]
        %v563 = vadd.f32 %v561, %v562
        %564 = vst [vmem:[%s162] sm:$0x1] %v563
        %s565 = sand.u32 %s93, 1
        %s566 = scalar_lea.sflag [#allocation3], %s565
        %s567 = sand.u32 %s93, 1
        %s568 = scalar_lea.vmem [#allocation2], %s567
        // Predicated region
        $region33: #{new_lcnn56_forward.3} parent=31 // pred_check
          %p569 = pneg %p103
        $region34: #{new_lcnn56_forward.3} parent=31 // pred_check_branch
          %571 = sbr.rel (%p569) target = $region36
        $region35: #{new_lcnn56_forward.3} parent=31 // pred_region
          %s573 = ssub.s32 16, 16
          %574 = vsyncadd %s566, %s573
          %s575 = smul.addr %s17, 16
          %s576 = scalar_lea.hbm %s3, %s575
          %s578 = sshll.u32 %s568, 4
          %s579 = int_to_ptr.vmem [resolvable:$true] %s578
          %581 = dma.vmem_to_hbm [thread:$0]  %s579, 16, %s576, %s566
        $region36: #{new_lcnn56_forward.3} parent=31 // pred_fallthru
          _
      $region32: #{new_lcnn56_forward.3} parent=5 // pred_fallthru
        _
      %p582 = scmp.le.s32.totalorder 2, %s12
      // Predicated region
      $region37: #{new_lcnn56_forward.3} parent=5 // pred_check
        %p583 = pneg %p582
      $region38: #{new_lcnn56_forward.3} parent=5 // pred_check_branch
        %585 = sbr.rel (%p583) target = $region40
      $region39: #{new_lcnn56_forward.3} parent=5 // pred_region
        %s586 = ssub.s32 %s12, 2
        // Predicated region
        $region41: #{new_lcnn56_forward.3} parent=39 // pred_check
          %p587 = pneg %p109
        $region42: #{new_lcnn56_forward.3} parent=39 // pred_check_branch
          %589 = sbr.rel (%p587) target = $region44
        $region43: #{new_lcnn56_forward.3} parent=39 // pred_region
          %s590 = sand.u32 %s94, 1
          %s591 = scalar_lea.sflag [#allocation3], %s590
          %s592 = sand.u32 %s94, 1
          %s593 = scalar_lea.vmem [#allocation2], %s592
          %594 = dma.done %s591, 16
        $region44: #{new_lcnn56_forward.3} parent=39 // pred_fallthru
          _
      $region40: #{new_lcnn56_forward.3} parent=5 // pred_fallthru
        _
    $region6: #{new_lcnn56_forward.3} parent=1 // loop_footer
      %s16 = sadd.s32 1, %s12
    $region7: #{new_lcnn56_forward.3} parent=1 // loop_footer_branch
      %11 = sbr.rel target = $region3
    $region8: #{new_lcnn56_forward.3} parent=1 // loop_exit
      _
    %595 = vsyncpa [#allocation3], 1
    %s596 = scalar_lea.sflag [#allocation3], 1
    %597 = vsyncpa %s596, 1

// kernel: new_lcnn56_forward.2
$region0: #{new_lcnn56_forward.2}
  #allocation0 [shape = 'u32[]', space=smem, size = 0x4, offset = 0x4, fixed_abs, tag = 'smem constant byte address 0x4 - core index']
  #allocation1 [shape = 'u32[144,128]{1,0:T(1,128)}', space=vmem, size = 0x12000, scoped, tag = 'internal scratch']
  %s0 = inlined_call_operand.vmem [shape: bf16[64,400], index: 0, kind: input, shape index: {}]
  %s1 = inlined_call_operand.vmem [shape: bf16[400,512], index: 1, kind: input, shape index: {}]
  %s2 = inlined_call_operand.hbm [shape: f32[256,128], index: 2, kind: input, shape index: {}]
  %s3 = inlined_call_operand.vmem [shape: f32[128,128], index: 3, kind: input, shape index: {}]
  %s4 = inlined_call_operand.vmem [shape: f32[64,128], index: 4, kind: output, shape index: {}]
  %s5 = sld [smem:[#allocation0]]
  $region53: #{new_lcnn56_forward.2} parent=0
    _
  %s7 = ssub.s32 1, %s5
  %s8 = scalar_select 0, %s7, %s5
  $region1: #{new_lcnn56_forward.2} parent=0
    #allocation2 [shape = 'u8[131072]{0}', space=vmem, size = 0x20000, scoped, tag = 'input window, operand 2, single buffered']
    #allocation3 [shape = 's32[2]{0}', space=sflag, size = 0x8, scoped, tag = 'scoped memory for new_lcnn56_forward.2']
    %9 = vsyncpa [#allocation3], 0
    loop: start=0, step=1, limit=4
    $region2: #{new_lcnn56_forward.2} parent=1 // loop_pre_header
      _
    $region3: #{new_lcnn56_forward.2} parent=1 // loop_header
      %s11 = sphi 0, %s15
      %p12 = scmp.ge.s32.totalorder %s11, 4
      %s21 = sphi 0, %s23
      %s24 = sphi 0, %s21
      %s25 = sphi 0, %s24
      %s41 = sphi 0, %s25
      %s45 = sphi 0, %s45
      %s47 = sphi 0, %s45
      %s48 = sphi 0, %s47
      %s62 = sphi 0, %s48
      %s66 = sphi 0, %s66
      %s68 = sphi 0, %s66
      %s69 = sphi 0, %s68
      %s83 = sphi 0, %s69
      %s87 = sphi 0, %s87
      %s89 = sphi 0, %s87
      %s90 = sphi 0, %s89
      %s104 = sphi 0, %s90
      %s110 = sphi 0, %s112
      %s113 = sphi 0, %s110
      %s114 = sphi 0, %s113
      %s130 = sphi 0, %s114
    $region4: #{new_lcnn56_forward.2} parent=1 // loop_header_branch
      %14 = sbr.rel (%p12) target = $region8
    $region5: #{new_lcnn56_forward.2} parent=1 // loop_body
      %s16 = ssub.s32 %s11, 1
      %s17 = ssub.s32 %s11, 2
      %s18 = sadd.s32 %s11, 1
      %s19 = ssub.s32 %s11, %s18
      %p20 = scmp.eq.s32.totalorder %s19, 0
      %s22 = sadd.s32 %s21, 1
      %s23 = scalar_select %p20, %s21, %s22
      %p26 = pneg %p20
      %p27 = scmp.eq.s32.totalorder %s11, 1
      %p28 = por %p26, %p27
      %p29 = scmp.ne.s32.totalorder %s21, %s24
      %p30 = scmp.eq.s32.totalorder %s11, 0
      %p31 = por %p29, %p30
      %p32 = scmp.ne.s32.totalorder %s21, %s24
      %p33 = scmp.eq.s32.totalorder %s16, 1
      %p34 = por %p32, %p33
      %p35 = scmp.ne.s32.totalorder %s24, %s25
      %p36 = scmp.eq.s32.totalorder %s16, 0
      %p37 = por %p35, %p36
      %p38 = scmp.ne.s32.totalorder %s24, %s25
      %p39 = scmp.eq.s32.totalorder %s17, 1
      %p40 = por %p38, %p39
      %p42 = scmp.ne.s32.totalorder %s25, %s41
      %p43 = scmp.eq.s32.totalorder %s17, 0
      %p44 = por %p42, %p43
      %s46 = sadd.s32 %s45, 1
      %p49 = scmp.eq.s32.totalorder %s11, 1
      %p50 = scmp.ne.s32.totalorder %s45, %s47
      %p51 = scmp.eq.s32.totalorder %s11, 0
      %p52 = por %p50, %p51
      %p53 = scmp.ne.s32.totalorder %s45, %s47
      %p54 = scmp.eq.s32.totalorder %s16, 1
      %p55 = por %p53, %p54
      %p56 = scmp.ne.s32.totalorder %s47, %s48
      %p57 = scmp.eq.s32.totalorder %s16, 0
      %p58 = por %p56, %p57
      %p59 = scmp.ne.s32.totalorder %s47, %s48
      %p60 = scmp.eq.s32.totalorder %s17, 1
      %p61 = por %p59, %p60
      %p63 = scmp.ne.s32.totalorder %s48, %s62
      %p64 = scmp.eq.s32.totalorder %s17, 0
      %p65 = por %p63, %p64
      %s67 = sadd.s32 %s66, 1
      %p70 = scmp.eq.s32.totalorder %s11, 1
      %p71 = scmp.ne.s32.totalorder %s66, %s68
      %p72 = scmp.eq.s32.totalorder %s11, 0
      %p73 = por %p71, %p72
      %p74 = scmp.ne.s32.totalorder %s66, %s68
      %p75 = scmp.eq.s32.totalorder %s16, 1
      %p76 = por %p74, %p75
      %p77 = scmp.ne.s32.totalorder %s68, %s69
      %p78 = scmp.eq.s32.totalorder %s16, 0
      %p79 = por %p77, %p78
      %p80 = scmp.ne.s32.totalorder %s68, %s69
      %p81 = scmp.eq.s32.totalorder %s17, 1
      %p82 = por %p80, %p81
      %p84 = scmp.ne.s32.totalorder %s69, %s83
      %p85 = scmp.eq.s32.totalorder %s17, 0
      %p86 = por %p84, %p85
      %s88 = sadd.s32 %s87, 1
      %p91 = scmp.eq.s32.totalorder %s11, 1
      %p92 = scmp.ne.s32.totalorder %s87, %s89
      %p93 = scmp.eq.s32.totalorder %s11, 0
      %p94 = por %p92, %p93
      %p95 = scmp.ne.s32.totalorder %s87, %s89
      %p96 = scmp.eq.s32.totalorder %s16, 1
      %p97 = por %p95, %p96
      %p98 = scmp.ne.s32.totalorder %s89, %s90
      %p99 = scmp.eq.s32.totalorder %s16, 0
      %p100 = por %p98, %p99
      %p101 = scmp.ne.s32.totalorder %s89, %s90
      %p102 = scmp.eq.s32.totalorder %s17, 1
      %p103 = por %p101, %p102
      %p105 = scmp.ne.s32.totalorder %s90, %s104
      %p106 = scmp.eq.s32.totalorder %s17, 0
      %p107 = por %p105, %p106
      %s108 = ssub.s32 %s11, %s18
      %p109 = scmp.eq.s32.totalorder %s108, 0
      %s111 = sadd.s32 %s110, 1
      %s112 = scalar_select %p109, %s110, %s111
      %p115 = pneg %p109
      %p116 = scmp.eq.s32.totalorder %s11, 1
      %p117 = por %p115, %p116
      %p118 = scmp.ne.s32.totalorder %s110, %s113
      %p119 = scmp.eq.s32.totalorder %s11, 0
      %p120 = por %p118, %p119
      %p121 = scmp.ne.s32.totalorder %s110, %s113
      %p122 = scmp.eq.s32.totalorder %s16, 1
      %p123 = por %p121, %p122
      %p124 = scmp.ne.s32.totalorder %s113, %s114
      %p125 = scmp.eq.s32.totalorder %s16, 0
      %p126 = por %p124, %p125
      %p127 = scmp.ne.s32.totalorder %s113, %s114
      %p128 = scmp.eq.s32.totalorder %s17, 1
      %p129 = por %p127, %p128
      %p131 = scmp.ne.s32.totalorder %s114, %s130
      %p132 = scmp.eq.s32.totalorder %s17, 0
      %p133 = por %p131, %p132
      %p134 = scmp.le.s32.totalorder 1, %s11
      %p135 = scmp.lt.s32.totalorder %s11, 3
      %p136 = pnand %p134, %p135
      %p137 = pneg %p136
      // Predicated region
      $region9: #{new_lcnn56_forward.2} parent=5 // pred_check
        _
      $region10: #{new_lcnn56_forward.2} parent=5 // pred_check_branch
        %139 = sbr.rel (%p136) target = $region12
      $region11: #{new_lcnn56_forward.2} parent=5 // pred_region
        %s140 = ssub.s32 %s11, 1
        // Predicated region
        $region13: #{new_lcnn56_forward.2} parent=11 // pred_check
          %p141 = pneg %p58
        $region14: #{new_lcnn56_forward.2} parent=11 // pred_check_branch
          %143 = sbr.rel (%p141) target = $region16
        $region15: #{new_lcnn56_forward.2} parent=11 // pred_region
          _
        $region16: #{new_lcnn56_forward.2} parent=11 // pred_fallthru
          _
        // Predicated region
        $region17: #{new_lcnn56_forward.2} parent=11 // pred_check
          %p144 = pneg %p79
        $region18: #{new_lcnn56_forward.2} parent=11 // pred_check_branch
          %146 = sbr.rel (%p144) target = $region20
        $region19: #{new_lcnn56_forward.2} parent=11 // pred_region
          %s148 = ssub.s32 4096, 4096
          %149 = vsyncadd [#allocation3], %s148
          %s150 = sshll.u32 [#allocation2], 4
          %s151 = int_to_ptr.vmem [resolvable:$true] %s150
          %156 = dma.hbm_to_vmem [thread:$0]  %s2, 4096, %s151, [#allocation3], 128, 128, 8
        $region20: #{new_lcnn56_forward.2} parent=11 // pred_fallthru
          _
        // Predicated region
        $region21: #{new_lcnn56_forward.2} parent=11 // pred_check
          %p157 = pneg %p100
        $region22: #{new_lcnn56_forward.2} parent=11 // pred_check_branch
          %159 = sbr.rel (%p157) target = $region24
        $region23: #{new_lcnn56_forward.2} parent=11 // pred_region
          _
        $region24: #{new_lcnn56_forward.2} parent=11 // pred_fallthru
          _
      $region12: #{new_lcnn56_forward.2} parent=5 // pred_fallthru
        _
      %p160 = scmp.lt.s32.totalorder %s11, 2
      // Predicated region
      $region25: #{new_lcnn56_forward.2} parent=5 // pred_check
        %p161 = pneg %p160
      $region26: #{new_lcnn56_forward.2} parent=5 // pred_check_branch
        %163 = sbr.rel (%p161) target = $region28
      $region27: #{new_lcnn56_forward.2} parent=5 // pred_region
        // Predicated region
        $region29: #{new_lcnn56_forward.2} parent=27 // pred_check
          %p164 = pneg %p31
        $region30: #{new_lcnn56_forward.2} parent=27 // pred_check_branch
          %166 = sbr.rel (%p164) target = $region32
        $region31: #{new_lcnn56_forward.2} parent=27 // pred_region
          %s167 = smul.u32 4, %s11
          %p168 = scmp.lt.s32.totalorder %s167, 7
          %s169 = scalar_select %p168, %s167, 7
          %s170 = smul.addr %s169, 4
          %s171 = smul.addr %s170, 4
          %s172 = scalar_lea.vmem %s0, %s171
          %s173 = smul.u32 4, %s11
        $region32: #{new_lcnn56_forward.2} parent=27 // pred_fallthru
          _
      $region28: #{new_lcnn56_forward.2} parent=5 // pred_fallthru
        _
      %p174 = scmp.le.s32.totalorder 1, %s11
      %p175 = scmp.lt.s32.totalorder %s11, 3
      %p176 = pnand %p174, %p175
      %p177 = pneg %p176
      // Predicated region
      $region33: #{new_lcnn56_forward.2} parent=5 // pred_check
        _
      $region34: #{new_lcnn56_forward.2} parent=5 // pred_check_branch
        %179 = sbr.rel (%p176) target = $region36
      $region35: #{new_lcnn56_forward.2} parent=5 // pred_region
        %s180 = ssub.s32 %s11, 1
        // Predicated region
        $region37: #{new_lcnn56_forward.2} parent=35 // pred_check
          %p181 = pneg %p79
        $region38: #{new_lcnn56_forward.2} parent=35 // pred_check_branch
          %183 = sbr.rel (%p181) target = $region40
        $region39: #{new_lcnn56_forward.2} parent=35 // pred_region
          %184 = dma.done [#allocation3], 4096
        $region40: #{new_lcnn56_forward.2} parent=35 // pred_fallthru
          _
        %s185 = smul.u32 4, %s16
        %p186 = scmp.lt.s32.totalorder %s185, 7
        %s187 = scalar_select %p186, %s185, 7
        %s188 = smul.addr %s187, 4
        %s189 = smul.addr %s188, 4
        %s190 = scalar_lea.vmem %s0, %s189
        %p191 = pneg %p37
        %p192 = pneg %p34
        %p193 = pneg %p58
        %p194 = pneg %p55
        %p195 = pneg %p79
        %p196 = pneg %p76
        %p197 = pneg %p100
        %p198 = pneg %p97
        %p199 = pneg %p126
        %p200 = pneg %p123
        %s201 = smul.u32 4, %s16
        %p202 = scmp.lt.s32.totalorder %s201, 7
        %s203 = scalar_select %p202, %s201, 7
        %s204 = smul.addr %s203, 8
        %s205 = scalar_lea.vmem %s4, %s204
        %s206 = smul.u32 4, %s16
        %p207 = scmp.lt.s32.totalorder %s206, 7
        %s208 = scalar_select %p207, %s206, 7
        %s209 = smul.addr %s208, 4
        %s210 = smul.addr %s209, 4
        %s211 = scalar_lea.vmem %s0, %s210
        %s212 = smul.u32 4, %s16
        %s213 = smul.u32 4, %s16
        %p214 = scmp.lt.s32.totalorder %s213, 7
        %s215 = scalar_select %p214, %s213, 7
        %s216 = smul.addr %s215, 8
        %s217 = scalar_lea.vmem %s4, %s216
        %s218 = smul.u32 4, %s16
        %v220 = vld [vmem:[%s211] sm:$0xff]
        %v221 = vld [vmem:[%s211 + $0x8] sm:$0xff]
        %v222 = vld [vmem:[%s211 + $0x10] sm:$0xff]
        %v223 = vld [vmem:[%s211 + $0x18] sm:$0xff]
        %v224 = vld [vmem:[%s211 + $0x20] sm:$0xff]
        %v225 = vld [vmem:[%s211 + $0x28] sm:$0xff]
        %v226 = vld [vmem:[%s211 + $0x30] sm:$0xff]
        %v227 = vld [vmem:[%s211 + $0x38] sm:$0xff]
        %v228 = vld [vmem:[%s1] sm:$0xff]
        %v229 = vld [vmem:[%s1 + $0x8] sm:$0xff]
        %v230 = vld [vmem:[%s1 + $0x10] sm:$0xff]
        %v231 = vld [vmem:[%s1 + $0x18] sm:$0xff]
        %v232 = vld [vmem:[%s1 + $0x20] sm:$0xff]
        %v233 = vld [vmem:[%s1 + $0x28] sm:$0xff]
        %v234 = vld [vmem:[%s1 + $0x30] sm:$0xff]
        %v235 = vld [vmem:[%s1 + $0x38] sm:$0xff]
        %v236 = vld [vmem:[%s1 + $0x40] sm:$0xff]
        %v237 = vld [vmem:[%s1 + $0x48] sm:$0xff]
        %v238 = vld [vmem:[%s1 + $0x50] sm:$0xff]
        %v239 = vld [vmem:[%s1 + $0x58] sm:$0xff]
        %v240 = vld [vmem:[%s1 + $0x60] sm:$0xff]
        %v241 = vld [vmem:[%s1 + $0x68] sm:$0xff]
        %v242 = vld [vmem:[%s1 + $0x70] sm:$0xff]
        %v243 = vld [vmem:[%s1 + $0x78] sm:$0xff]
        %v244 = vld [vmem:[%s1 + $0x80] sm:$0xff]
        %v245 = vld [vmem:[%s1 + $0x88] sm:$0xff]
        %v246 = vld [vmem:[%s1 + $0x90] sm:$0xff]
        %v247 = vld [vmem:[%s1 + $0x98] sm:$0xff]
        %v248 = vld [vmem:[%s1 + $0xa0] sm:$0xff]
        %v249 = vld [vmem:[%s1 + $0xa8] sm:$0xff]
        %v250 = vld [vmem:[%s1 + $0xb0] sm:$0xff]
        %v251 = vld [vmem:[%s1 + $0xb8] sm:$0xff]
        %v252 = vld [vmem:[%s1 + $0xc0] sm:$0xff]
        %v253 = vld [vmem:[%s1 + $0xc8] sm:$0xff]
        %v254 = vld [vmem:[%s1 + $0xd0] sm:$0xff]
        %v255 = vld [vmem:[%s1 + $0xd8] sm:$0xff]
        %v256 = vld [vmem:[%s1 + $0xe0] sm:$0xff]
        %v257 = vld [vmem:[%s1 + $0xe8] sm:$0xff]
        %v258 = vld [vmem:[%s1 + $0xf0] sm:$0xff]
        %v259 = vld [vmem:[%s1 + $0xf8] sm:$0xff]
        %v260 = vld [vmem:[%s1 + $0x100] sm:$0xff]
        %v261 = vld [vmem:[%s1 + $0x108] sm:$0xff]
        %v262 = vld [vmem:[%s1 + $0x110] sm:$0xff]
        %v263 = vld [vmem:[%s1 + $0x118] sm:$0xff]
        %v264 = vld [vmem:[%s1 + $0x120] sm:$0xff]
        %v265 = vld [vmem:[%s1 + $0x128] sm:$0xff]
        %v266 = vld [vmem:[%s1 + $0x130] sm:$0xff]
        %v267 = vld [vmem:[%s1 + $0x138] sm:$0xff]
        %v268 = vld [vmem:[%s1 + $0x140] sm:$0xff]
        %v269 = vld [vmem:[%s1 + $0x148] sm:$0xff]
        %v270 = vld [vmem:[%s1 + $0x150] sm:$0xff]
        %v271 = vld [vmem:[%s1 + $0x158] sm:$0xff]
        %v272 = vld [vmem:[%s1 + $0x160] sm:$0xff]
        %v273 = vld [vmem:[%s1 + $0x168] sm:$0xff]
        %v274 = vld [vmem:[%s1 + $0x170] sm:$0xff]
        %v275 = vld [vmem:[%s1 + $0x178] sm:$0xff]
        %v276 = vld [vmem:[%s1 + $0x180] sm:$0xff]
        %v277 = vld [vmem:[%s1 + $0x188] sm:$0xff]
        %v278 = vld [vmem:[%s1 + $0x190] sm:$0xff]
        %v279 = vld [vmem:[%s1 + $0x198] sm:$0xff]
        %v280 = vld [vmem:[%s1 + $0x1a0] sm:$0xff]
        %v281 = vld [vmem:[%s1 + $0x1a8] sm:$0xff]
        %v282 = vld [vmem:[%s1 + $0x1b0] sm:$0xff]
        %v283 = vld [vmem:[%s1 + $0x1b8] sm:$0xff]
        %v284 = vld [vmem:[%s1 + $0x1c0] sm:$0xff]
        %v285 = vld [vmem:[%s1 + $0x1c8] sm:$0xff]
        %v286 = vld [vmem:[%s1 + $0x1d0] sm:$0xff]
        %v287 = vld [vmem:[%s1 + $0x1d8] sm:$0xff]
        %v288 = vld [vmem:[%s1 + $0x1e0] sm:$0xff]
        %v289 = vld [vmem:[%s1 + $0x1e8] sm:$0xff]
        %v290 = vld [vmem:[%s1 + $0x1f0] sm:$0xff]
        %v291 = vld [vmem:[%s1 + $0x1f8] sm:$0xff]
        %v292 = vld [vmem:[%s1 + $0x200] sm:$0xff]
        %v293 = vld [vmem:[%s1 + $0x208] sm:$0xff]
        %v294 = vld [vmem:[%s1 + $0x210] sm:$0xff]
        %v295 = vld [vmem:[%s1 + $0x218] sm:$0xff]
        %v296 = vld [vmem:[%s1 + $0x220] sm:$0xff]
        %v297 = vld [vmem:[%s1 + $0x228] sm:$0xff]
        %v298 = vld [vmem:[%s1 + $0x230] sm:$0xff]
        %v299 = vld [vmem:[%s1 + $0x238] sm:$0xff]
        %v300 = vld [vmem:[%s1 + $0x240] sm:$0xff]
        %v301 = vld [vmem:[%s1 + $0x248] sm:$0xff]
        %v302 = vld [vmem:[%s1 + $0x250] sm:$0xff]
        %v303 = vld [vmem:[%s1 + $0x258] sm:$0xff]
        %v304 = vld [vmem:[%s1 + $0x260] sm:$0xff]
        %v305 = vld [vmem:[%s1 + $0x268] sm:$0xff]
        %v306 = vld [vmem:[%s1 + $0x270] sm:$0xff]
        %v307 = vld [vmem:[%s1 + $0x278] sm:$0xff]
        %v308 = vld [vmem:[%s1 + $0x280] sm:$0xff]
        %v309 = vld [vmem:[%s1 + $0x288] sm:$0xff]
        %v310 = vld [vmem:[%s1 + $0x290] sm:$0xff]
        %v311 = vld [vmem:[%s1 + $0x298] sm:$0xff]
        %v312 = vld [vmem:[%s1 + $0x2a0] sm:$0xff]
        %v313 = vld [vmem:[%s1 + $0x2a8] sm:$0xff]
        %v314 = vld [vmem:[%s1 + $0x2b0] sm:$0xff]
        %v315 = vld [vmem:[%s1 + $0x2b8] sm:$0xff]
        %v316 = vld [vmem:[%s1 + $0x2c0] sm:$0xff]
        %v317 = vld [vmem:[%s1 + $0x2c8] sm:$0xff]
        %v318 = vld [vmem:[%s1 + $0x2d0] sm:$0xff]
        %v319 = vld [vmem:[%s1 + $0x2d8] sm:$0xff]
        %v320 = vld [vmem:[%s1 + $0x2e0] sm:$0xff]
        %v321 = vld [vmem:[%s1 + $0x2e8] sm:$0xff]
        %v322 = vld [vmem:[%s1 + $0x2f0] sm:$0xff]
        %v323 = vld [vmem:[%s1 + $0x2f8] sm:$0xff]
        %v324 = vld [vmem:[%s1 + $0x300] sm:$0xff]
        %v325 = vld [vmem:[%s1 + $0x308] sm:$0xff]
        %v326 = vld [vmem:[%s1 + $0x310] sm:$0xff]
        %v327 = vld [vmem:[%s1 + $0x318] sm:$0xff]
        %v336 = vunpack.c.l.b16 %v220
        %v337 = vunpack.c.h.b16 %v220
        %v338 = vunpack.c.l.b16 %v221
        %v339 = vunpack.c.h.b16 %v221
        %v340 = vunpack.c.l.b16 %v222
        %v341 = vunpack.c.h.b16 %v222
        %v342 = vunpack.c.l.b16 %v223
        %v343 = vunpack.c.h.b16 %v223
        %v344 = vunpack.c.l.b16 %v224
        %v345 = vunpack.c.h.b16 %v224
        %v346 = vunpack.c.l.b16 %v225
        %v347 = vunpack.c.h.b16 %v225
        %v348 = vunpack.c.l.b16 %v226
        %v349 = vunpack.c.h.b16 %v226
        %v350 = vunpack.c.l.b16 %v227
        %v351 = vunpack.c.h.b16 %v227
        %v352 = vpack.c.b16 %v340, %v336
        %v353 = vpack.c.b16 %v341, %v337
        %v354 = vpack.c.b16 %v342, %v338
        %v355 = vpack.c.b16 %v343, %v339
        %v356 = vpack.c.b16 %v348, %v344
        %v357 = vpack.c.b16 %v349, %v345
        %v358 = vpack.c.b16 %v350, %v346
        %v359 = vpack.c.b16 %v351, %v347
        %v466 = vunpack.c.l.b16 %v228
        %v467 = vunpack.c.h.b16 %v228
        %v468 = vunpack.c.l.b16 %v229
        %v469 = vunpack.c.h.b16 %v229
        %v470 = vunpack.c.l.b16 %v230
        %v471 = vunpack.c.h.b16 %v230
        %v472 = vunpack.c.l.b16 %v231
        %v473 = vunpack.c.h.b16 %v231
        %v474 = vunpack.c.l.b16 %v232
        %v475 = vunpack.c.h.b16 %v232
        %v476 = vunpack.c.l.b16 %v233
        %v477 = vunpack.c.h.b16 %v233
        %v478 = vunpack.c.l.b16 %v234
        %v479 = vunpack.c.h.b16 %v234
        %v480 = vunpack.c.l.b16 %v235
        %v481 = vunpack.c.h.b16 %v235
        %v482 = vunpack.c.l.b16 %v236
        %v483 = vunpack.c.h.b16 %v236
        %v484 = vunpack.c.l.b16 %v237
        %v485 = vunpack.c.h.b16 %v237
        %v486 = vunpack.c.l.b16 %v238
        %v487 = vunpack.c.h.b16 %v238
        %v488 = vunpack.c.l.b16 %v239
        %v489 = vunpack.c.h.b16 %v239
        %v490 = vunpack.c.l.b16 %v240
        %v491 = vunpack.c.h.b16 %v240
        %v492 = vunpack.c.l.b16 %v241
        %v493 = vunpack.c.h.b16 %v241
        %v494 = vunpack.c.l.b16 %v242
        %v495 = vunpack.c.h.b16 %v242
        %v496 = vunpack.c.l.b16 %v243
        %v497 = vunpack.c.h.b16 %v243
        %v498 = vunpack.c.l.b16 %v244
        %v499 = vunpack.c.h.b16 %v244
        %v500 = vunpack.c.l.b16 %v245
        %v501 = vunpack.c.h.b16 %v245
        %v502 = vunpack.c.l.b16 %v246
        %v503 = vunpack.c.h.b16 %v246
        %v504 = vunpack.c.l.b16 %v247
        %v505 = vunpack.c.h.b16 %v247
        %v506 = vunpack.c.l.b16 %v248
        %v507 = vunpack.c.h.b16 %v248
        %v508 = vunpack.c.l.b16 %v249
        %v509 = vunpack.c.h.b16 %v249
        %v510 = vunpack.c.l.b16 %v250
        %v511 = vunpack.c.h.b16 %v250
        %v512 = vunpack.c.l.b16 %v251
        %v513 = vunpack.c.h.b16 %v251
        %v514 = vunpack.c.l.b16 %v252
        %v515 = vunpack.c.h.b16 %v252
        %v516 = vunpack.c.l.b16 %v253
        %v517 = vunpack.c.h.b16 %v253
        %v518 = vunpack.c.l.b16 %v254
        %v519 = vunpack.c.h.b16 %v254
        %v520 = vunpack.c.l.b16 %v255
        %v521 = vunpack.c.h.b16 %v255
        %v522 = vunpack.c.l.b16 %v256
        %v523 = vunpack.c.h.b16 %v256
        %v524 = vunpack.c.l.b16 %v257
        %v525 = vunpack.c.h.b16 %v257
        %v526 = vunpack.c.l.b16 %v258
        %v527 = vunpack.c.h.b16 %v258
        %v528 = vunpack.c.l.b16 %v259
        %v529 = vunpack.c.h.b16 %v259
        %v530 = vunpack.c.l.b16 %v260
        %v531 = vunpack.c.h.b16 %v260
        %v532 = vunpack.c.l.b16 %v261
        %v533 = vunpack.c.h.b16 %v261
        %v534 = vunpack.c.l.b16 %v262
        %v535 = vunpack.c.h.b16 %v262
        %v536 = vunpack.c.l.b16 %v263
        %v537 = vunpack.c.h.b16 %v263
        %v538 = vunpack.c.l.b16 %v264
        %v539 = vunpack.c.h.b16 %v264
        %v540 = vunpack.c.l.b16 %v265
        %v541 = vunpack.c.h.b16 %v265
        %v542 = vunpack.c.l.b16 %v266
        %v543 = vunpack.c.h.b16 %v266
        %v544 = vunpack.c.l.b16 %v267
        %v545 = vunpack.c.h.b16 %v267
        %v546 = vunpack.c.l.b16 %v268
        %v547 = vunpack.c.h.b16 %v268
        %v548 = vunpack.c.l.b16 %v269
        %v549 = vunpack.c.h.b16 %v269
        %v550 = vunpack.c.l.b16 %v270
        %v551 = vunpack.c.h.b16 %v270
        %v552 = vunpack.c.l.b16 %v271
        %v553 = vunpack.c.h.b16 %v271
        %v554 = vunpack.c.l.b16 %v272
        %v555 = vunpack.c.h.b16 %v272
        %v556 = vunpack.c.l.b16 %v273
        %v557 = vunpack.c.h.b16 %v273
        %v558 = vunpack.c.l.b16 %v274
        %v559 = vunpack.c.h.b16 %v274
        %v560 = vunpack.c.l.b16 %v275
        %v561 = vunpack.c.h.b16 %v275
        %v562 = vunpack.c.l.b16 %v276
        %v563 = vunpack.c.h.b16 %v276
        %v564 = vunpack.c.l.b16 %v277
        %v565 = vunpack.c.h.b16 %v277
        %v566 = vunpack.c.l.b16 %v278
        %v567 = vunpack.c.h.b16 %v278
        %v568 = vunpack.c.l.b16 %v279
        %v569 = vunpack.c.h.b16 %v279
        %v570 = vunpack.c.l.b16 %v280
        %v571 = vunpack.c.h.b16 %v280
        %v572 = vunpack.c.l.b16 %v281
        %v573 = vunpack.c.h.b16 %v281
        %v574 = vunpack.c.l.b16 %v282
        %v575 = vunpack.c.h.b16 %v282
        %v576 = vunpack.c.l.b16 %v283
        %v577 = vunpack.c.h.b16 %v283
        %v578 = vunpack.c.l.b16 %v284
        %v579 = vunpack.c.h.b16 %v284
        %v580 = vunpack.c.l.b16 %v285
        %v581 = vunpack.c.h.b16 %v285
        %v582 = vunpack.c.l.b16 %v286
        %v583 = vunpack.c.h.b16 %v286
        %v584 = vunpack.c.l.b16 %v287
        %v585 = vunpack.c.h.b16 %v287
        %v586 = vunpack.c.l.b16 %v288
        %v587 = vunpack.c.h.b16 %v288
        %v588 = vunpack.c.l.b16 %v289
        %v589 = vunpack.c.h.b16 %v289
        %v590 = vunpack.c.l.b16 %v290
        %v591 = vunpack.c.h.b16 %v290
        %v592 = vunpack.c.l.b16 %v291
        %v593 = vunpack.c.h.b16 %v291
        %v594 = vunpack.c.l.b16 %v292
        %v595 = vunpack.c.h.b16 %v292
        %v596 = vunpack.c.l.b16 %v293
        %v597 = vunpack.c.h.b16 %v293
        %v598 = vunpack.c.l.b16 %v294
        %v599 = vunpack.c.h.b16 %v294
        %v600 = vunpack.c.l.b16 %v295
        %v601 = vunpack.c.h.b16 %v295
        %v602 = vunpack.c.l.b16 %v296
        %v603 = vunpack.c.h.b16 %v296
        %v604 = vunpack.c.l.b16 %v297
        %v605 = vunpack.c.h.b16 %v297
        %v606 = vunpack.c.l.b16 %v298
        %v607 = vunpack.c.h.b16 %v298
        %v608 = vunpack.c.l.b16 %v299
        %v609 = vunpack.c.h.b16 %v299
        %v610 = vunpack.c.l.b16 %v300
        %v611 = vunpack.c.h.b16 %v300
        %v612 = vunpack.c.l.b16 %v301
        %v613 = vunpack.c.h.b16 %v301
        %v614 = vunpack.c.l.b16 %v302
        %v615 = vunpack.c.h.b16 %v302
        %v616 = vunpack.c.l.b16 %v303
        %v617 = vunpack.c.h.b16 %v303
        %v618 = vunpack.c.l.b16 %v304
        %v619 = vunpack.c.h.b16 %v304
        %v620 = vunpack.c.l.b16 %v305
        %v621 = vunpack.c.h.b16 %v305
        %v622 = vunpack.c.l.b16 %v306
        %v623 = vunpack.c.h.b16 %v306
        %v624 = vunpack.c.l.b16 %v307
        %v625 = vunpack.c.h.b16 %v307
        %v626 = vunpack.c.l.b16 %v308
        %v627 = vunpack.c.h.b16 %v308
        %v628 = vunpack.c.l.b16 %v309
        %v629 = vunpack.c.h.b16 %v309
        %v630 = vunpack.c.l.b16 %v310
        %v631 = vunpack.c.h.b16 %v310
        %v632 = vunpack.c.l.b16 %v311
        %v633 = vunpack.c.h.b16 %v311
        %v634 = vunpack.c.l.b16 %v312
        %v635 = vunpack.c.h.b16 %v312
        %v636 = vunpack.c.l.b16 %v313
        %v637 = vunpack.c.h.b16 %v313
        %v638 = vunpack.c.l.b16 %v314
        %v639 = vunpack.c.h.b16 %v314
        %v640 = vunpack.c.l.b16 %v315
        %v641 = vunpack.c.h.b16 %v315
        %v642 = vunpack.c.l.b16 %v316
        %v643 = vunpack.c.h.b16 %v316
        %v644 = vunpack.c.l.b16 %v317
        %v645 = vunpack.c.h.b16 %v317
        %v646 = vunpack.c.l.b16 %v318
        %v647 = vunpack.c.h.b16 %v318
        %v648 = vunpack.c.l.b16 %v319
        %v649 = vunpack.c.h.b16 %v319
        %v650 = vunpack.c.l.b16 %v320
        %v651 = vunpack.c.h.b16 %v320
        %v652 = vunpack.c.l.b16 %v321
        %v653 = vunpack.c.h.b16 %v321
        %v654 = vunpack.c.l.b16 %v322
        %v655 = vunpack.c.h.b16 %v322
        %v656 = vunpack.c.l.b16 %v323
        %v657 = vunpack.c.h.b16 %v323
        %v658 = vunpack.c.l.b16 %v324
        %v659 = vunpack.c.h.b16 %v324
        %v660 = vunpack.c.l.b16 %v325
        %v661 = vunpack.c.h.b16 %v325
        %v662 = vunpack.c.l.b16 %v326
        %v663 = vunpack.c.h.b16 %v326
        %v664 = vunpack.c.l.b16 %v327
        %v665 = vunpack.c.h.b16 %v327
        %v666 = vpack.c.b16 %v470, %v466
        %v667 = vpack.c.b16 %v471, %v467
        %v668 = vpack.c.b16 %v472, %v468
        %v669 = vpack.c.b16 %v473, %v469
        %v670 = vpack.c.b16 %v478, %v474
        %v671 = vpack.c.b16 %v479, %v475
        %v672 = vpack.c.b16 %v480, %v476
        %v673 = vpack.c.b16 %v481, %v477
        %v674 = vpack.c.b16 %v486, %v482
        %v675 = vpack.c.b16 %v487, %v483
        %v676 = vpack.c.b16 %v488, %v484
        %v677 = vpack.c.b16 %v489, %v485
        %v678 = vpack.c.b16 %v494, %v490
        %v679 = vpack.c.b16 %v495, %v491
        %v680 = vpack.c.b16 %v496, %v492
        %v681 = vpack.c.b16 %v497, %v493
        %v682 = vpack.c.b16 %v502, %v498
        %v683 = vpack.c.b16 %v503, %v499
        %v684 = vpack.c.b16 %v504, %v500
        %v685 = vpack.c.b16 %v505, %v501
        %v686 = vpack.c.b16 %v510, %v506
        %v687 = vpack.c.b16 %v511, %v507
        %v688 = vpack.c.b16 %v512, %v508
        %v689 = vpack.c.b16 %v513, %v509
        %v690 = vpack.c.b16 %v518, %v514
        %v691 = vpack.c.b16 %v519, %v515
        %v692 = vpack.c.b16 %v520, %v516
        %v693 = vpack.c.b16 %v521, %v517
        %v694 = vpack.c.b16 %v526, %v522
        %v695 = vpack.c.b16 %v527, %v523
        %v696 = vpack.c.b16 %v528, %v524
        %v697 = vpack.c.b16 %v529, %v525
        %v698 = vpack.c.b16 %v534, %v530
        %v699 = vpack.c.b16 %v535, %v531
        %v700 = vpack.c.b16 %v536, %v532
        %v701 = vpack.c.b16 %v537, %v533
        %v702 = vpack.c.b16 %v542, %v538
        %v703 = vpack.c.b16 %v543, %v539
        %v704 = vpack.c.b16 %v544, %v540
        %v705 = vpack.c.b16 %v545, %v541
        %v706 = vpack.c.b16 %v550, %v546
        %v707 = vpack.c.b16 %v551, %v547
        %v708 = vpack.c.b16 %v552, %v548
        %v709 = vpack.c.b16 %v553, %v549
        %v710 = vpack.c.b16 %v558, %v554
        %v711 = vpack.c.b16 %v559, %v555
        %v712 = vpack.c.b16 %v560, %v556
        %v713 = vpack.c.b16 %v561, %v557
        %v714 = vpack.c.b16 %v566, %v562
        %v715 = vpack.c.b16 %v567, %v563
        %v716 = vpack.c.b16 %v568, %v564
        %v717 = vpack.c.b16 %v569, %v565
        %v718 = vpack.c.b16 %v574, %v570
        %v719 = vpack.c.b16 %v575, %v571
        %v720 = vpack.c.b16 %v576, %v572
        %v721 = vpack.c.b16 %v577, %v573
        %v722 = vpack.c.b16 %v582, %v578
        %v723 = vpack.c.b16 %v583, %v579
        %v724 = vpack.c.b16 %v584, %v580
        %v725 = vpack.c.b16 %v585, %v581
        %v726 = vpack.c.b16 %v590, %v586
        %v727 = vpack.c.b16 %v591, %v587
        %v728 = vpack.c.b16 %v592, %v588
        %v729 = vpack.c.b16 %v593, %v589
        %v730 = vpack.c.b16 %v598, %v594
        %v731 = vpack.c.b16 %v599, %v595
        %v732 = vpack.c.b16 %v600, %v596
        %v733 = vpack.c.b16 %v601, %v597
        %v734 = vpack.c.b16 %v606, %v602
        %v735 = vpack.c.b16 %v607, %v603
        %v736 = vpack.c.b16 %v608, %v604
        %v737 = vpack.c.b16 %v609, %v605
        %v738 = vpack.c.b16 %v614, %v610
        %v739 = vpack.c.b16 %v615, %v611
        %v740 = vpack.c.b16 %v616, %v612
        %v741 = vpack.c.b16 %v617, %v613
        %v742 = vpack.c.b16 %v622, %v618
        %v743 = vpack.c.b16 %v623, %v619
        %v744 = vpack.c.b16 %v624, %v620
        %v745 = vpack.c.b16 %v625, %v621
        %v746 = vpack.c.b16 %v630, %v626
        %v747 = vpack.c.b16 %v631, %v627
        %v748 = vpack.c.b16 %v632, %v628
        %v749 = vpack.c.b16 %v633, %v629
        %v750 = vpack.c.b16 %v638, %v634
        %v751 = vpack.c.b16 %v639, %v635
        %v752 = vpack.c.b16 %v640, %v636
        %v753 = vpack.c.b16 %v641, %v637
        %v754 = vpack.c.b16 %v646, %v642
        %v755 = vpack.c.b16 %v647, %v643
        %v756 = vpack.c.b16 %v648, %v644
        %v757 = vpack.c.b16 %v649, %v645
        %v758 = vpack.c.b16 %v654, %v650
        %v759 = vpack.c.b16 %v655, %v651
        %v760 = vpack.c.b16 %v656, %v652
        %v761 = vpack.c.b16 %v657, %v653
        %v762 = vpack.c.b16 %v662, %v658
        %v763 = vpack.c.b16 %v663, %v659
        %v764 = vpack.c.b16 %v664, %v660
        %v765 = vpack.c.b16 %v665, %v661
        %vm866 = vcmask 130048
        %v868 = vsel %vm866, %v355, 0
        %v871 = vsel %vm866, %v359, 0
        %873 = vmatprep.subr.bf16.mxu0 %v695
        %874 = vmatpush1.bf16.msra.mxu0 %v694
        %875 = vmatprep.subr.bf16.mxu0 %v691
        %876 = vmatpush1.bf16.msra.mxu0 %v690
        %877 = vmatprep.subr.bf16.mxu0 %v687
        %878 = vmatpush1.bf16.msra.mxu0 %v686
        %879 = vmatprep.subr.bf16.mxu0 %v683
        %880 = vmatpush1.bf16.msra.mxu0 %v682
        %881 = vmatprep.subr.bf16.mxu0 %v679
        %882 = vmatpush1.bf16.msra.mxu0 %v678
        %883 = vmatprep.subr.bf16.mxu0 %v675
        %884 = vmatpush1.bf16.msra.mxu0 %v674
        %885 = vmatprep.subr.bf16.mxu0 %v671
        %886 = vmatpush1.bf16.msra.mxu0 %v670
        %887 = vmatprep.subr.bf16.mxu0 %v667
        %888 = vmatpush1.bf16.msra.mxu0 %v666
        %889 = vmatprep.subr.bf16.mxu0 %v727
        %890 = vmatpush2.bf16.msra.mxu0 %v726
        %891 = vmatprep.subr.bf16.mxu0 %v723
        %892 = vmatpush2.bf16.msra.mxu0 %v722
        %893 = vmatprep.subr.bf16.mxu0 %v719
        %894 = vmatpush2.bf16.msra.mxu0 %v718
        %895 = vmatprep.subr.bf16.mxu0 %v715
        %896 = vmatpush2.bf16.msra.mxu0 %v714
        %897 = vmatprep.subr.bf16.mxu0 %v711
        %898 = vmatpush2.bf16.msra.mxu0 %v710
        %899 = vmatprep.subr.bf16.mxu0 %v707
        %900 = vmatpush2.bf16.msra.mxu0 %v706
        %901 = vmatprep.subr.bf16.mxu0 %v703
        %902 = vmatpush2.bf16.msra.mxu0 %v702
        %903 = vmatprep.subr.bf16.mxu0 %v699
        %904 = vmatpush2.bf16.msra.mxu0 %v698
        %905 = vmatprep.mubr.bf16.mxu0 %v353
        %906 = vmatmul.mubr.bf16.gmra.mxu0 %v352
        %v907 = vpop.f32.mrf.mxu0
        %v908 = vadd.f32 0.0, %v907
        %v909 = vpop.f32.mrf.mxu0
        %v910 = vadd.f32 0.0, %v909
        %v911 = vpop.f32.mrf.mxu0
        %v912 = vadd.f32 0.0, %v911
        %v913 = vpop.f32.mrf.mxu0
        %v914 = vadd.f32 0.0, %v913
        %915 = vmatprep.mubr.bf16.mxu0 %v357
        %916 = vmatmul.mubr.bf16.gmra.mxu0 %v356
        %v917 = vpop.f32.mrf.mxu0
        %v918 = vadd.f32 0.0, %v917
        %v919 = vpop.f32.mrf.mxu0
        %v920 = vadd.f32 0.0, %v919
        %v921 = vpop.f32.mrf.mxu0
        %v922 = vadd.f32 0.0, %v921
        %v923 = vpop.f32.mrf.mxu0
        %v924 = vadd.f32 0.0, %v923
        %925 = vdwg.mxu0
        %926 = vmatprep.subr.bf16.mxu0 %v759
        %927 = vmatpush1.bf16.msra.mxu0 %v758
        %928 = vmatprep.subr.bf16.mxu0 %v755
        %929 = vmatpush1.bf16.msra.mxu0 %v754
        %930 = vmatprep.subr.bf16.mxu0 %v751
        %931 = vmatpush1.bf16.msra.mxu0 %v750
        %932 = vmatprep.subr.bf16.mxu0 %v747
        %933 = vmatpush1.bf16.msra.mxu0 %v746
        %934 = vmatprep.subr.bf16.mxu0 %v743
        %935 = vmatpush1.bf16.msra.mxu0 %v742
        %936 = vmatprep.subr.bf16.mxu0 %v739
        %937 = vmatpush1.bf16.msra.mxu0 %v738
        %938 = vmatprep.subr.bf16.mxu0 %v735
        %939 = vmatpush1.bf16.msra.mxu0 %v734
        %940 = vmatprep.subr.bf16.mxu0 %v731
        %941 = vmatpush1.bf16.msra.mxu0 %v730
        %942 = vmatprep.subr.bf16.mxu0 0
        %943 = vmatpush2.bf16.msra.mxu0 0
        %944 = vmatprep.subr.bf16.mxu0 0
        %945 = vmatpush2.bf16.msra.mxu0 0
        %946 = vmatprep.subr.bf16.mxu0 0
        %947 = vmatpush2.bf16.msra.mxu0 0
        %948 = vmatprep.subr.bf16.mxu0 0
        %949 = vmatpush2.bf16.msra.mxu0 0
        %950 = vmatprep.subr.bf16.mxu0 0
        %951 = vmatpush2.bf16.msra.mxu0 0
        %952 = vmatprep.subr.bf16.mxu0 0
        %953 = vmatpush2.bf16.msra.mxu0 0
        %954 = vmatprep.subr.bf16.mxu0 0
        %955 = vmatpush2.bf16.msra.mxu0 0
        %956 = vmatprep.subr.bf16.mxu0 %v763
        %957 = vmatpush2.bf16.msra.mxu0 %v762
        %958 = vmatprep.mubr.bf16.mxu0 %v868
        %959 = vmatmul.mubr.bf16.gmra.mxu0 %v354
        %v960 = vpop.f32.mrf.mxu0
        %v961 = vadd.f32 %v908, %v960
        %v962 = vpop.f32.mrf.mxu0
        %v963 = vadd.f32 %v910, %v962
        %v964 = vpop.f32.mrf.mxu0
        %v965 = vadd.f32 %v912, %v964
        %v966 = vpop.f32.mrf.mxu0
        %v967 = vadd.f32 %v914, %v966
        %968 = vmatprep.mubr.bf16.mxu0 %v871
        %969 = vmatmul.mubr.bf16.gmra.mxu0 %v358
        %v970 = vpop.f32.mrf.mxu0
        %v971 = vadd.f32 %v918, %v970
        %v972 = vpop.f32.mrf.mxu0
        %v973 = vadd.f32 %v920, %v972
        %v974 = vpop.f32.mrf.mxu0
        %v975 = vadd.f32 %v922, %v974
        %v976 = vpop.f32.mrf.mxu0
        %v977 = vadd.f32 %v924, %v976
        %978 = vdwg.mxu0
        %979 = vmatprep.subr.bf16.mxu0 %v697
        %980 = vmatpush1.bf16.msra.mxu0 %v696
        %981 = vmatprep.subr.bf16.mxu0 %v693
        %982 = vmatpush1.bf16.msra.mxu0 %v692
        %983 = vmatprep.subr.bf16.mxu0 %v689
        %984 = vmatpush1.bf16.msra.mxu0 %v688
        %985 = vmatprep.subr.bf16.mxu0 %v685
        %986 = vmatpush1.bf16.msra.mxu0 %v684
        %987 = vmatprep.subr.bf16.mxu0 %v681
        %988 = vmatpush1.bf16.msra.mxu0 %v680
        %989 = vmatprep.subr.bf16.mxu0 %v677
        %990 = vmatpush1.bf16.msra.mxu0 %v676
        %991 = vmatprep.subr.bf16.mxu0 %v673
        %992 = vmatpush1.bf16.msra.mxu0 %v672
        %993 = vmatprep.subr.bf16.mxu0 %v669
        %994 = vmatpush1.bf16.msra.mxu0 %v668
        %995 = vmatprep.subr.bf16.mxu0 %v729
        %996 = vmatpush2.bf16.msra.mxu0 %v728
        %997 = vmatprep.subr.bf16.mxu0 %v725
        %998 = vmatpush2.bf16.msra.mxu0 %v724
        %999 = vmatprep.subr.bf16.mxu0 %v721
        %1000 = vmatpush2.bf16.msra.mxu0 %v720
        %1001 = vmatprep.subr.bf16.mxu0 %v717
        %1002 = vmatpush2.bf16.msra.mxu0 %v716
        %1003 = vmatprep.subr.bf16.mxu0 %v713
        %1004 = vmatpush2.bf16.msra.mxu0 %v712
        %1005 = vmatprep.subr.bf16.mxu0 %v709
        %1006 = vmatpush2.bf16.msra.mxu0 %v708
        %1007 = vmatprep.subr.bf16.mxu0 %v705
        %1008 = vmatpush2.bf16.msra.mxu0 %v704
        %1009 = vmatprep.subr.bf16.mxu0 %v701
        %1010 = vmatpush2.bf16.msra.mxu0 %v700
        %1011 = vmatprep.mubr.bf16.mxu0 %v353
        %1012 = vmatmul.mubr.bf16.gmra.mxu0 %v352
        %v1013 = vpop.f32.mrf.mxu0
        %v1014 = vadd.f32 0.0, %v1013
        %v1015 = vpop.f32.mrf.mxu0
        %v1016 = vadd.f32 0.0, %v1015
        %v1017 = vpop.f32.mrf.mxu0
        %v1018 = vadd.f32 0.0, %v1017
        %v1019 = vpop.f32.mrf.mxu0
        %v1020 = vadd.f32 0.0, %v1019
        %1021 = vmatprep.mubr.bf16.mxu0 %v357
        %1022 = vmatmul.mubr.bf16.gmra.mxu0 %v356
        %v1023 = vpop.f32.mrf.mxu0
        %v1024 = vadd.f32 0.0, %v1023
        %v1025 = vpop.f32.mrf.mxu0
        %v1026 = vadd.f32 0.0, %v1025
        %v1027 = vpop.f32.mrf.mxu0
        %v1028 = vadd.f32 0.0, %v1027
        %v1029 = vpop.f32.mrf.mxu0
        %v1030 = vadd.f32 0.0, %v1029
        %1031 = vdwg.mxu0
        %1032 = vmatprep.subr.bf16.mxu0 %v761
        %1033 = vmatpush1.bf16.msra.mxu0 %v760
        %1034 = vmatprep.subr.bf16.mxu0 %v757
        %1035 = vmatpush1.bf16.msra.mxu0 %v756
        %1036 = vmatprep.subr.bf16.mxu0 %v753
        %1037 = vmatpush1.bf16.msra.mxu0 %v752
        %1038 = vmatprep.subr.bf16.mxu0 %v749
        %1039 = vmatpush1.bf16.msra.mxu0 %v748
        %1040 = vmatprep.subr.bf16.mxu0 %v745
        %1041 = vmatpush1.bf16.msra.mxu0 %v744
        %1042 = vmatprep.subr.bf16.mxu0 %v741
        %1043 = vmatpush1.bf16.msra.mxu0 %v740
        %1044 = vmatprep.subr.bf16.mxu0 %v737
        %1045 = vmatpush1.bf16.msra.mxu0 %v736
        %1046 = vmatprep.subr.bf16.mxu0 %v733
        %1047 = vmatpush1.bf16.msra.mxu0 %v732
        %1048 = vmatprep.subr.bf16.mxu0 0
        %1049 = vmatpush2.bf16.msra.mxu0 0
        %1050 = vmatprep.subr.bf16.mxu0 0
        %1051 = vmatpush2.bf16.msra.mxu0 0
        %1052 = vmatprep.subr.bf16.mxu0 0
        %1053 = vmatpush2.bf16.msra.mxu0 0
        %1054 = vmatprep.subr.bf16.mxu0 0
        %1055 = vmatpush2.bf16.msra.mxu0 0
        %1056 = vmatprep.subr.bf16.mxu0 0
        %1057 = vmatpush2.bf16.msra.mxu0 0
        %1058 = vmatprep.subr.bf16.mxu0 0
        %1059 = vmatpush2.bf16.msra.mxu0 0
        %1060 = vmatprep.subr.bf16.mxu0 0
        %1061 = vmatpush2.bf16.msra.mxu0 0
        %1062 = vmatprep.subr.bf16.mxu0 %v765
        %1063 = vmatpush2.bf16.msra.mxu0 %v764
        %1064 = vmatprep.mubr.bf16.mxu0 %v868
        %1065 = vmatmul.mubr.bf16.gmra.mxu0 %v354
        %v1066 = vpop.f32.mrf.mxu0
        %v1067 = vadd.f32 %v1014, %v1066
        %v1068 = vpop.f32.mrf.mxu0
        %v1069 = vadd.f32 %v1016, %v1068
        %v1070 = vpop.f32.mrf.mxu0
        %v1071 = vadd.f32 %v1018, %v1070
        %v1072 = vpop.f32.mrf.mxu0
        %v1073 = vadd.f32 %v1020, %v1072
        %1074 = vmatprep.mubr.bf16.mxu0 %v871
        %1075 = vmatmul.mubr.bf16.gmra.mxu0 %v358
        %v1076 = vpop.f32.mrf.mxu0
        %v1077 = vadd.f32 %v1024, %v1076
        %v1078 = vpop.f32.mrf.mxu0
        %v1079 = vadd.f32 %v1026, %v1078
        %v1080 = vpop.f32.mrf.mxu0
        %v1081 = vadd.f32 %v1028, %v1080
        %v1082 = vpop.f32.mrf.mxu0
        %v1083 = vadd.f32 %v1030, %v1082
        %1084 = vdwg.mxu0
        %v1085 = vmul.f32 %v961, %v961
        %v1086 = vmul.f32 %v963, %v963
        %v1087 = vmul.f32 %v965, %v965
        %v1088 = vmul.f32 %v967, %v967
        %v1089 = vmul.f32 %v971, %v971
        %v1090 = vmul.f32 %v973, %v973
        %v1091 = vmul.f32 %v975, %v975
        %v1092 = vmul.f32 %v977, %v977
        %v1093 = vmul.f32 %v1067, %v1067
        %v1094 = vmul.f32 %v1069, %v1069
        %v1095 = vmul.f32 %v1071, %v1071
        %v1096 = vmul.f32 %v1073, %v1073
        %v1097 = vmul.f32 %v1077, %v1077
        %v1098 = vmul.f32 %v1079, %v1079
        %v1099 = vmul.f32 %v1081, %v1081
        %v1100 = vmul.f32 %v1083, %v1083
        %v1101 = vadd.f32 %v1085, %v1093
        %v1102 = vadd.f32 %v1086, %v1094
        %v1103 = vadd.f32 %v1087, %v1095
        %v1104 = vadd.f32 %v1088, %v1096
        %v1105 = vadd.f32 %v1089, %v1097
        %v1106 = vadd.f32 %v1090, %v1098
        %v1107 = vadd.f32 %v1091, %v1099
        %v1108 = vadd.f32 %v1092, %v1100
        %v1109 = vld [vmem:[#allocation2] sm:$0xff]
        %v1110 = vld [vmem:[#allocation2 + $0x8] sm:$0xff]
        %v1111 = vld [vmem:[#allocation2 + $0x10] sm:$0xff]
        %v1112 = vld [vmem:[#allocation2 + $0x18] sm:$0xff]
        %v1113 = vld [vmem:[#allocation2 + $0x20] sm:$0xff]
        %v1114 = vld [vmem:[#allocation2 + $0x28] sm:$0xff]
        %v1115 = vld [vmem:[#allocation2 + $0x30] sm:$0xff]
        %v1116 = vld [vmem:[#allocation2 + $0x38] sm:$0xff]
        %v1117 = vld [vmem:[#allocation2 + $0x40] sm:$0xff]
        %v1118 = vld [vmem:[#allocation2 + $0x48] sm:$0xff]
        %v1119 = vld [vmem:[#allocation2 + $0x50] sm:$0xff]
        %v1120 = vld [vmem:[#allocation2 + $0x58] sm:$0xff]
        %v1121 = vld [vmem:[#allocation2 + $0x60] sm:$0xff]
        %v1122 = vld [vmem:[#allocation2 + $0x68] sm:$0xff]
        %v1123 = vld [vmem:[#allocation2 + $0x70] sm:$0xff]
        %v1124 = vld [vmem:[#allocation2 + $0x78] sm:$0xff]
        %v1125 = vld [vmem:[#allocation2 + $0x80] sm:$0xff]
        %v1126 = vld [vmem:[#allocation2 + $0x88] sm:$0xff]
        %v1127 = vld [vmem:[#allocation2 + $0x90] sm:$0xff]
        %v1128 = vld [vmem:[#allocation2 + $0x98] sm:$0xff]
        %v1129 = vld [vmem:[#allocation2 + $0xa0] sm:$0xff]
        %v1130 = vld [vmem:[#allocation2 + $0xa8] sm:$0xff]
        %v1131 = vld [vmem:[#allocation2 + $0xb0] sm:$0xff]
        %v1132 = vld [vmem:[#allocation2 + $0xb8] sm:$0xff]
        %v1133 = vld [vmem:[#allocation2 + $0xc0] sm:$0xff]
        %v1134 = vld [vmem:[#allocation2 + $0xc8] sm:$0xff]
        %v1135 = vld [vmem:[#allocation2 + $0xd0] sm:$0xff]
        %v1136 = vld [vmem:[#allocation2 + $0xd8] sm:$0xff]
        %v1137 = vld [vmem:[#allocation2 + $0xe0] sm:$0xff]
        %v1138 = vld [vmem:[#allocation2 + $0xe8] sm:$0xff]
        %v1139 = vld [vmem:[#allocation2 + $0xf0] sm:$0xff]
        %v1140 = vld [vmem:[#allocation2 + $0xf8] sm:$0xff]
        %1141 = vmatprep.subr.mxu0 0.0
        %1142 = vmatpush1.msra.mxu0 %v1124
        %1143 = vmatprep.subr.mxu0 0.0
        %1144 = vmatpush1.msra.mxu0 %v1123
        %1145 = vmatprep.subr.mxu0 0.0
        %1146 = vmatpush1.msra.mxu0 %v1122
        %1147 = vmatprep.subr.mxu0 0.0
        %1148 = vmatpush1.msra.mxu0 %v1121
        %1149 = vmatprep.subr.mxu0 0.0
        %1150 = vmatpush1.msra.mxu0 %v1120
        %1151 = vmatprep.subr.mxu0 0.0
        %1152 = vmatpush1.msra.mxu0 %v1119
        %1153 = vmatprep.subr.mxu0 0.0
        %1154 = vmatpush1.msra.mxu0 %v1118
        %1155 = vmatprep.subr.mxu0 0.0
        %1156 = vmatpush1.msra.mxu0 %v1117
        %1157 = vmatprep.subr.mxu0 0.0
        %1158 = vmatpush1.msra.mxu0 %v1116
        %1159 = vmatprep.subr.mxu0 0.0
        %1160 = vmatpush1.msra.mxu0 %v1115
        %1161 = vmatprep.subr.mxu0 0.0
        %1162 = vmatpush1.msra.mxu0 %v1114
        %1163 = vmatprep.subr.mxu0 0.0
        %1164 = vmatpush1.msra.mxu0 %v1113
        %1165 = vmatprep.subr.mxu0 0.0
        %1166 = vmatpush1.msra.mxu0 %v1112
        %1167 = vmatprep.subr.mxu0 0.0
        %1168 = vmatpush1.msra.mxu0 %v1111
        %1169 = vmatprep.subr.mxu0 0.0
        %1170 = vmatpush1.msra.mxu0 %v1110
        %1171 = vmatprep.subr.mxu0 0.0
        %1172 = vmatpush1.msra.mxu0 %v1109
        %1173 = vmatprep.subr.mxu0 0.0
        %1174 = vmatpush2.msra.mxu0 %v1140
        %1175 = vmatprep.subr.mxu0 0.0
        %1176 = vmatpush2.msra.mxu0 %v1139
        %1177 = vmatprep.subr.mxu0 0.0
        %1178 = vmatpush2.msra.mxu0 %v1138
        %1179 = vmatprep.subr.mxu0 0.0
        %1180 = vmatpush2.msra.mxu0 %v1137
        %1181 = vmatprep.subr.mxu0 0.0
        %1182 = vmatpush2.msra.mxu0 %v1136
        %1183 = vmatprep.subr.mxu0 0.0
        %1184 = vmatpush2.msra.mxu0 %v1135
        %1185 = vmatprep.subr.mxu0 0.0
        %1186 = vmatpush2.msra.mxu0 %v1134
        %1187 = vmatprep.subr.mxu0 0.0
        %1188 = vmatpush2.msra.mxu0 %v1133
        %1189 = vmatprep.subr.mxu0 0.0
        %1190 = vmatpush2.msra.mxu0 %v1132
        %1191 = vmatprep.subr.mxu0 0.0
        %1192 = vmatpush2.msra.mxu0 %v1131
        %1193 = vmatprep.subr.mxu0 0.0
        %1194 = vmatpush2.msra.mxu0 %v1130
        %1195 = vmatprep.subr.mxu0 0.0
        %1196 = vmatpush2.msra.mxu0 %v1129
        %1197 = vmatprep.subr.mxu0 0.0
        %1198 = vmatpush2.msra.mxu0 %v1128
        %1199 = vmatprep.subr.mxu0 0.0
        %1200 = vmatpush2.msra.mxu0 %v1127
        %1201 = vmatprep.subr.mxu0 0.0
        %1202 = vmatpush2.msra.mxu0 %v1126
        %1203 = vmatprep.subr.mxu0 0.0
        %1204 = vmatpush2.msra.mxu0 %v1125
        %1205 = vmatprep.mubr.f32.mxu0 %v1102
        %1206 = vmatmul.mubr.f32.gmra.mxu0 %v1101
        %v1207 = vpop.f32.mrf.mxu0
        %v1208 = vadd.f32 0.0, %v1207
        %v1209 = vpop.f32.mrf.mxu0
        %1210 = vmatprep.mubr.f32.mxu0 %v1104
        %1211 = vmatmul.mubr.f32.gmra.mxu0 %v1103
        %v1212 = vpop.f32.mrf.mxu0
        %v1213 = vadd.f32 0.0, %v1212
        %v1214 = vpop.f32.mrf.mxu0
        %1215 = vmatprep.mubr.f32.mxu0 %v1106
        %1216 = vmatmul.mubr.f32.gmra.mxu0 %v1105
        %v1217 = vpop.f32.mrf.mxu0
        %v1218 = vadd.f32 0.0, %v1217
        %v1219 = vpop.f32.mrf.mxu0
        %1220 = vmatprep.mubr.f32.mxu0 %v1108
        %1221 = vmatmul.mubr.f32.gmra.mxu0 %v1107
        %v1222 = vpop.f32.mrf.mxu0
        %v1223 = vadd.f32 0.0, %v1222
        %v1224 = vpop.f32.mrf.mxu0
        %1225 = vdwg.mxu0
        %v1226 = vmax.f32 %v1208, 1e-10
        %v1227 = vmax.f32 %v1213, 1e-10
        %v1228 = vmax.f32 %v1218, 1e-10
        %v1229 = vmax.f32 %v1223, 1e-10
        %v1230 = vlog2.pop %v1226
        %v1231 = vmul.f32 %v1230, 0.6931472
        %v1232 = vlog2.pop %v1227
        %v1233 = vmul.f32 %v1232, 0.6931472
        %v1234 = vlog2.pop %v1228
        %v1235 = vmul.f32 %v1234, 0.6931472
        %v1236 = vlog2.pop %v1229
        %v1237 = vmul.f32 %v1236, 0.6931472
        %v1238 = vmul.f32 %v1231, 0.4342945
        %v1239 = vmul.f32 %v1233, 0.4342945
        %v1240 = vmul.f32 %v1235, 0.4342945
        %v1241 = vmul.f32 %v1237, 0.4342945
        %v1242 = vmul.f32 %v1238, 10.0
        %v1243 = vmul.f32 %v1239, 10.0
        %v1244 = vmul.f32 %v1240, 10.0
        %v1245 = vmul.f32 %v1241, 10.0
        %v1246 = vld [vmem:[%s3] sm:$0xff]
        %v1247 = vld [vmem:[%s3 + $0x8] sm:$0xff]
        %v1248 = vld [vmem:[%s3 + $0x10] sm:$0xff]
        %v1249 = vld [vmem:[%s3 + $0x18] sm:$0xff]
        %v1250 = vld [vmem:[%s3 + $0x20] sm:$0xff]
        %v1251 = vld [vmem:[%s3 + $0x28] sm:$0xff]
        %v1252 = vld [vmem:[%s3 + $0x30] sm:$0xff]
        %v1253 = vld [vmem:[%s3 + $0x38] sm:$0xff]
        %v1254 = vld [vmem:[%s3 + $0x40] sm:$0xff]
        %v1255 = vld [vmem:[%s3 + $0x48] sm:$0xff]
        %v1256 = vld [vmem:[%s3 + $0x50] sm:$0xff]
        %v1257 = vld [vmem:[%s3 + $0x58] sm:$0xff]
        %v1258 = vld [vmem:[%s3 + $0x60] sm:$0xff]
        %v1259 = vld [vmem:[%s3 + $0x68] sm:$0xff]
        %v1260 = vld [vmem:[%s3 + $0x70] sm:$0xff]
        %v1261 = vld [vmem:[%s3 + $0x78] sm:$0xff]
        %1262 = vmatprep.subr.mxu0 0.0
        %1263 = vmatpush1.msra.mxu0 %v1261
        %1264 = vmatprep.subr.mxu0 0.0
        %1265 = vmatpush1.msra.mxu0 %v1260
        %1266 = vmatprep.subr.mxu0 0.0
        %1267 = vmatpush1.msra.mxu0 %v1259
        %1268 = vmatprep.subr.mxu0 0.0
        %1269 = vmatpush1.msra.mxu0 %v1258
        %1270 = vmatprep.subr.mxu0 0.0
        %1271 = vmatpush1.msra.mxu0 %v1257
        %1272 = vmatprep.subr.mxu0 0.0
        %1273 = vmatpush1.msra.mxu0 %v1256
        %1274 = vmatprep.subr.mxu0 0.0
        %1275 = vmatpush1.msra.mxu0 %v1255
        %1276 = vmatprep.subr.mxu0 0.0
        %1277 = vmatpush1.msra.mxu0 %v1254
        %1278 = vmatprep.subr.mxu0 0.0
        %1279 = vmatpush1.msra.mxu0 %v1253
        %1280 = vmatprep.subr.mxu0 0.0
        %1281 = vmatpush1.msra.mxu0 %v1252
        %1282 = vmatprep.subr.mxu0 0.0
        %1283 = vmatpush1.msra.mxu0 %v1251
        %1284 = vmatprep.subr.mxu0 0.0
        %1285 = vmatpush1.msra.mxu0 %v1250
        %1286 = vmatprep.subr.mxu0 0.0
        %1287 = vmatpush1.msra.mxu0 %v1249
        %1288 = vmatprep.subr.mxu0 0.0
        %1289 = vmatpush1.msra.mxu0 %v1248
        %1290 = vmatprep.subr.mxu0 0.0
        %1291 = vmatpush1.msra.mxu0 %v1247
        %1292 = vmatprep.subr.mxu0 0.0
        %1293 = vmatpush1.msra.mxu0 %v1246
        %1294 = vmatprep.subr.mxu0 0.0
        %1295 = vmatpush2.msra.mxu0 0.0
        %1296 = vmatprep.subr.mxu0 0.0
        %1297 = vmatpush2.msra.mxu0 0.0
        %1298 = vmatprep.subr.mxu0 0.0
        %1299 = vmatpush2.msra.mxu0 0.0
        %1300 = vmatprep.subr.mxu0 0.0
        %1301 = vmatpush2.msra.mxu0 0.0
        %1302 = vmatprep.subr.mxu0 0.0
        %1303 = vmatpush2.msra.mxu0 0.0
        %1304 = vmatprep.subr.mxu0 0.0
        %1305 = vmatpush2.msra.mxu0 0.0
        %1306 = vmatprep.subr.mxu0 0.0
        %1307 = vmatpush2.msra.mxu0 0.0
        %1308 = vmatprep.subr.mxu0 0.0
        %1309 = vmatpush2.msra.mxu0 0.0
        %1310 = vmatprep.subr.mxu0 0.0
        %1311 = vmatpush2.msra.mxu0 0.0
        %1312 = vmatprep.subr.mxu0 0.0
        %1313 = vmatpush2.msra.mxu0 0.0
        %1314 = vmatprep.subr.mxu0 0.0
        %1315 = vmatpush2.msra.mxu0 0.0
        %1316 = vmatprep.subr.mxu0 0.0
        %1317 = vmatpush2.msra.mxu0 0.0
        %1318 = vmatprep.subr.mxu0 0.0
        %1319 = vmatpush2.msra.mxu0 0.0
        %1320 = vmatprep.subr.mxu0 0.0
        %1321 = vmatpush2.msra.mxu0 0.0
        %1322 = vmatprep.subr.mxu0 0.0
        %1323 = vmatpush2.msra.mxu0 0.0
        %1324 = vmatprep.subr.mxu0 0.0
        %1325 = vmatpush2.msra.mxu0 0.0
        %1326 = vmatprep.mubr.f32.mxu0 0.0
        %1327 = vmatmul.mubr.f32.gmra.mxu0 %v1242
        %v1328 = vpop.f32.mrf.mxu0
        %v1329 = vadd.f32 0.0, %v1328
        %v1330 = vpop.f32.mrf.mxu0
        %1331 = vmatprep.mubr.f32.mxu0 0.0
        %1332 = vmatmul.mubr.f32.gmra.mxu0 %v1243
        %v1333 = vpop.f32.mrf.mxu0
        %v1334 = vadd.f32 0.0, %v1333
        %v1335 = vpop.f32.mrf.mxu0
        %1336 = vmatprep.mubr.f32.mxu0 0.0
        %1337 = vmatmul.mubr.f32.gmra.mxu0 %v1244
        %v1338 = vpop.f32.mrf.mxu0
        %v1339 = vadd.f32 0.0, %v1338
        %v1340 = vpop.f32.mrf.mxu0
        %1341 = vmatprep.mubr.f32.mxu0 0.0
        %1342 = vmatmul.mubr.f32.gmra.mxu0 %v1245
        %v1343 = vpop.f32.mrf.mxu0
        %v1344 = vadd.f32 0.0, %v1343
        %v1345 = vpop.f32.mrf.mxu0
        %1346 = vdwg.mxu0
        %1347 = vst [vmem:[%s217] sm:$0xff] %v1329
        %1348 = vst [vmem:[%s217 + $0x8] sm:$0xff] %v1334
        %1349 = vst [vmem:[%s217 + $0x10] sm:$0xff] %v1339
        %1350 = vst [vmem:[%s217 + $0x18] sm:$0xff] %v1344
        %s1351 = smul.u32 4, %s16
        %p1352 = scmp.lt.s32.totalorder %s1351, 7
        %s1353 = scalar_select %p1352, %s1351, 7
        %s1354 = smul.addr %s1353, 8
        %s1355 = scalar_lea.vmem %s4, %s1354
        // Predicated region
        $region41: #{new_lcnn56_forward.2} parent=35 // pred_check
          %p1356 = pneg %p123
        $region42: #{new_lcnn56_forward.2} parent=35 // pred_check_branch
          %1358 = sbr.rel (%p1356) target = $region44
        $region43: #{new_lcnn56_forward.2} parent=35 // pred_region
          %s1359 = smul.u32 4, %s16
        $region44: #{new_lcnn56_forward.2} parent=35 // pred_fallthru
          _
      $region36: #{new_lcnn56_forward.2} parent=5 // pred_fallthru
        _
      %p1360 = scmp.le.s32.totalorder 2, %s11
      // Predicated region
      $region45: #{new_lcnn56_forward.2} parent=5 // pred_check
        %p1361 = pneg %p1360
      $region46: #{new_lcnn56_forward.2} parent=5 // pred_check_branch
        %1363 = sbr.rel (%p1361) target = $region48
      $region47: #{new_lcnn56_forward.2} parent=5 // pred_region
        %s1364 = ssub.s32 %s11, 2
        // Predicated region
        $region49: #{new_lcnn56_forward.2} parent=47 // pred_check
          %p1365 = pneg %p129
        $region50: #{new_lcnn56_forward.2} parent=47 // pred_check_branch
          %1367 = sbr.rel (%p1365) target = $region52
        $region51: #{new_lcnn56_forward.2} parent=47 // pred_region
          %s1368 = smul.u32 4, %s17
          %p1369 = scmp.lt.s32.totalorder %s1368, 7
          %s1370 = scalar_select %p1369, %s1368, 7
          %s1371 = smul.addr %s1370, 8
          %s1372 = scalar_lea.vmem %s4, %s1371
        $region52: #{new_lcnn56_forward.2} parent=47 // pred_fallthru
          _
      $region48: #{new_lcnn56_forward.2} parent=5 // pred_fallthru
        _
    $region6: #{new_lcnn56_forward.2} parent=1 // loop_footer
      %s15 = sadd.s32 1, %s11
    $region7: #{new_lcnn56_forward.2} parent=1 // loop_footer_branch
      %10 = sbr.rel target = $region3
    $region8: #{new_lcnn56_forward.2} parent=1 // loop_exit
      _
    %1373 = vsyncpa [#allocation3], 1
    %s1374 = scalar_lea.sflag [#allocation3], 1
    %1375 = vsyncpa %s1374, 1

</llo_original>
